<compile_context>
chip_gen: v7x
topology: tpu7x:2x2x1
jax: 0.10.0
libtpu: 0.0.40
codegen_flags: <defaults>
</compile_context>

<pallas_src>
import jax
import jax.numpy as jnp
from jax.experimental import pallas as pl
from jax.experimental.pallas import tpu as pltpu


def _bottleneck_kernel(x_ref, xl_ref, xr_ref,
                       w1_ref, b1_ref, w2_ref, b2_ref, w3_ref, b3_ref,
                       out_ref):
    t = pl.program_id(1)
    last_t = pl.num_programs(1) - 1

    x = x_ref[...]                                   # (TL, Cin) input dtype
    w1 = w1_ref[...]                                 # (Cin, W) bf16
    b1 = b1_ref[...]                                 # (1, W)  f32

    # --- conv1 (1x1, BN1 scale folded into w1) + bias + ReLU -----------------
    h = jnp.dot(x.astype(jnp.bfloat16), w1, preferred_element_type=jnp.float32)
    h = jnp.maximum(h + b1, 0.0)                     # (TL, W) f32

    # halo rows of h for the k=3 conv; conv2 zero-pads h, so the halo is zero
    # at the true sequence boundary (first / last tile).
    xl = xl_ref[7:8, :].astype(jnp.bfloat16)         # row  t*TL - 1 of x
    xr = xr_ref[0:1, :].astype(jnp.bfloat16)         # row (t+1)*TL  of x
    hl = jnp.maximum(jnp.dot(xl, w1, preferred_element_type=jnp.float32) + b1, 0.0)
    hr = jnp.maximum(jnp.dot(xr, w1, preferred_element_type=jnp.float32) + b1, 0.0)
    hl = hl * (t > 0).astype(jnp.float32)            # left pad -> 0
    hr = hr * (t < last_t).astype(jnp.float32)       # right pad -> 0

    # --- conv2 (k=3, pad=1, BN2 scale folded) as ONE K=3W matmul -------------
    tl = h.shape[0]
    hh = jnp.concatenate([hl, h, hr], axis=0)        # (TL+2, W) f32, halo'd h
    h3 = jnp.concatenate([hh[0:tl], hh[1:tl + 1], hh[2:tl + 2]], axis=1)  # (TL, 3W)
    g = jnp.dot(h3.astype(jnp.bfloat16), w2_ref[...],
                preferred_element_type=jnp.float32)
    g = jnp.maximum(g + b2_ref[...], 0.0)            # (TL, W) f32

    # --- conv3 (1x1, BN3 scale folded) + bias + residual + ReLU --------------
    o = jnp.dot(g.astype(jnp.bfloat16), w3_ref[...],
                preferred_element_type=jnp.float32)
    o = o + b3_ref[...] + x.astype(jnp.float32)
    out_ref[...] = jnp.maximum(o, 0.0).astype(out_ref.dtype)


def bottleneck_pallas(x, prep, *, seq_tile=256):
    """x: (N, L, Cin) channels-last.  prep: folded/packed params. -> (N, L, Cout)."""
    N, L, Cin = x.shape
    w1, b1, w2, b2, w3, b3 = prep
    W = w1.shape[1]
    Cout = w3.shape[1]
    assert Cout == Cin, "identity residual requires inplanes == planes * expansion"

    tl = min(seq_tile, L)
    assert tl % 8 == 0 and L % tl == 0, "sequence length must be a multiple of the tile"
    T = L // tl
    nblk = tl // 8                                   # halo blocks are 8 rows

    def xmain_map(n, t):
        return (n, t, 0)

    def xleft_map(n, t):                             # 8 rows ending at t*TL
        return (n, jnp.maximum(t * nblk - 1, 0), 0)

    def xright_map(n, t):                            # 8 rows starting at (t+1)*TL
        return (n, jnp.minimum((t + 1) * nblk, L // 8 - 1), 0)

    def rep(a):                                      # full-array resident operand
        return pl.BlockSpec(a.shape, lambda n, t: (0,) * a.ndim)

    grid_spec = pltpu.PrefetchScalarGridSpec(
        num_scalar_prefetch=0,
        grid=(N, T),
        in_specs=[
            pl.BlockSpec((pl.Squeezed(), tl, Cin), xmain_map),
            pl.BlockSpec((pl.Squeezed(), 8, Cin), xleft_map),
            pl.BlockSpec((pl.Squeezed(), 8, Cin), xright_map),
            rep(w1), rep(b1), rep(w2), rep(b2), rep(w3), rep(b3),
        ],
        out_specs=pl.BlockSpec((pl.Squeezed(), tl, Cout), xmain_map),
    )

    itemsize = x.dtype.itemsize
    w_bytes = sum(int(a.size) * a.dtype.itemsize for a in prep)
    io_bytes = 2 * (tl * Cin + tl * Cout + 16 * Cin) * itemsize       # double-buffered
    scratch_bytes = (tl + 2) * W * 4 + tl * (3 * W * 4 + 3 * W * 2 + 2 * W * 4
                                             + 2 * Cout * 4)
    vmem_limit = int(min(max(4 * (io_bytes + 2 * w_bytes + scratch_bytes),
                             8 * 1024 * 1024),
                         64 * 1024 * 1024))          # fits v7x's 64 MiB VMEM

    cost = pl.CostEstimate(
        flops=int(2 * N * L * (Cin * W + 3 * W * W + W * Cout)),
        transcendentals=0,
        bytes_accessed=int(2 * N * L * Cin * itemsize + w_bytes),
    )

    return pl.pallas_call(
        _bottleneck_kernel,
        out_shape=jax.ShapeDtypeStruct((N, L, Cout), x.dtype),
        grid_spec=grid_spec,
        compiler_params=pltpu.CompilerParams(
            dimension_semantics=("parallel", "parallel"),
            vmem_limit_bytes=vmem_limit),
        cost_estimate=cost,
    )(x, x, x, w1, b1, w2, b2, w3, b3)


# ----------------------------- parameters ------------------------------------

def _make_params(key, inplanes, planes, base_width=64, groups=1):
    """Synthetic PyTorch-layout params: conv weights + BatchNorm running stats."""
    expansion = 4
    width = int(planes * (base_width / 64.0)) * groups
    cout = planes * expansion
    ks = jax.random.split(key, 6)

    def bn(k, c):
        k1, k2, k3, k4 = jax.random.split(k, 4)
        gamma = 1.0 + 0.1 * jax.random.normal(k1, (c,), jnp.float32)
        beta = 0.1 * jax.random.normal(k2, (c,), jnp.float32)
        mean = 0.1 * jax.random.normal(k3, (c,), jnp.float32)
        var = jnp.abs(jax.random.normal(k4, (c,), jnp.float32)) + 0.5
        return (gamma, beta, mean, var)

    w1 = jax.random.normal(ks[0], (width, inplanes), jnp.float32) * (inplanes ** -0.5)
    w2 = jax.random.normal(ks[1], (width, width, 3), jnp.float32) * ((3 * width) ** -0.5)
    w3 = jax.random.normal(ks[2], (cout, width), jnp.float32) * (width ** -0.5)
    return (w1, bn(ks[3], width), w2, bn(ks[4], width), w3, bn(ks[5], cout))


def _prepare_params(raw, eps=1e-5, weight_dtype=jnp.bfloat16):
    """Fold eval-mode BN scale into conv weights, transpose to (Cin, Cout),
    pack the three k=3 taps along K as [prev; cur; next], cast weights to bf16."""
    w1, bn1, w2, bn2, w3, bn3 = raw

    def fold(p):
        gamma, beta, mean, var = p
        s = gamma / jnp.sqrt(var + eps)
        return s, beta - mean * s

    s1, b1 = fold(bn1)
    s2, b2 = fold(bn2)
    s3, b3 = fold(bn3)
    W = w1.shape[0]
    Cout = w3.shape[0]

    w1f = (w1.T * s1[None, :]).astype(weight_dtype)                      # (Cin, W)
    w2f = jnp.concatenate([w2[:, :, k].T for k in range(3)], axis=0)     # (3W, W)
    w2f = (w2f * s2[None, :]).astype(weight_dtype)
    w3f = (w3.T * s3[None, :]).astype(weight_dtype)                      # (W, Cout)
    return (w1f, b1.reshape(1, W).astype(jnp.float32),
            w2f, b2.reshape(1, W).astype(jnp.float32),
            w3f, b3.reshape(1, Cout).astype(jnp.float32))


# ----------------------------- references ------------------------------------

def _reference_f32(x, raw, eps=1e-5):
    """Eval-mode Bottleneck forward, pure f32, PyTorch conv1d semantics (NLC)."""
    w1, bn1, w2, bn2, w3, bn3 = raw

    def bn(h, p):
        gamma, beta, mean, var = p
        return (h - mean) * (gamma / jnp.sqrt(var + eps)) + beta

    L = x.shape[1]
    h = jax.nn.relu(bn(jnp.einsum('nlc,wc->nlw', x, w1), bn1))
    hp = jnp.pad(h, ((0, 0), (1, 1), (0, 0)))
    g = sum(jnp.einsum('nlw,vw->nlv', hp[:, k:k + L], w2[:, :, k]) for k in range(3))
    g = jax.nn.relu(bn(g, bn2))
    o = bn(jnp.einsum('nlw,cw->nlc', g, w3), bn3)
    return jax.nn.relu(o + x)


def _reference_mixed(x, prep):
    """Same math as the kernel (folded bf16 weights, bf16 operands, f32 accum)."""
    w1, b1, w2, b2, w3, b3 = prep
    N, L, _ = x.shape
    W = w1.shape[1]
    f32, bf16 = jnp.float32, jnp.bfloat16
    h = jax.nn.relu(jnp.einsum('nlc,cw->nlw', x.astype(bf16), w1,
                               preferred_element_type=f32) + b1)
    hb = h.astype(f32)
    z = jnp.zeros((N, 1, W), f32)
    h3 = jnp.concatenate([
        jnp.concatenate([z, hb[:, :-1]], axis=1),
        hb,
        jnp.concatenate([hb[:, 1:], z], axis=1)], axis=2)
    g = jax.nn.relu(jnp.einsum('nlk,kw->nlw', h3.astype(bf16), w2,
                               preferred_element_type=f32) + b2)
    o = jnp.einsum('nlw,wc->nlc', g.astype(bf16), w3,
                   preferred_element_type=f32) + b3
    return jax.nn.relu(o + x.astype(f32))


if __name__ == "__main__":
    key = jax.random.PRNGKey(0)
    k_x, k_p = jax.random.split(key)

    # Small but lane-dense config: planes=32 -> width=32, Cout=128=inplanes
    # (identity residual).  L=512 with TL=128 exercises interior + boundary tiles.
    N, L = 2, 512
    inplanes, planes = 128, 32
    x = jax.random.normal(k_x, (N, L, inplanes), jnp.float32)   # (N, L, C)

    raw = _make_params(k_p, inplanes, planes)
    prep = _prepare_params(raw)

    out = jax.block_until_ready(bottleneck_pallas(x, prep, seq_tile=128))
    assert out.shape == (N, L, planes * 4)

    # Tight check vs a reference using the exact same precision policy.
    ref_m = _reference_mixed(x, prep)
    assert jnp.allclose(out, ref_m, atol=2e-3, rtol=2e-3), "mismatch vs mixed-precision reference"

    # Loose check vs pure-f32 PyTorch-semantics reference (bf16 rounding only).
    ref_f = _reference_f32(x, raw)
    diff = jnp.abs(out - ref_f)
    assert float(jnp.mean(diff)) < 2e-2 and float(jnp.max(diff)) < 0.25, \
        "mismatch vs f32 reference"

    print("KERNEL_OK")
</pallas_src>

<mosaic_0001>
module attributes {stable_mosaic.version = 11 : i64} {
  func.func @_bottleneck_kernel(%arg0: i32, %arg1: i32, %arg2: memref<1x128x128xf32, #tpu.memory_space<vmem>>, %arg3: memref<1x8x128xf32, #tpu.memory_space<vmem>>, %arg4: memref<1x8x128xf32, #tpu.memory_space<vmem>>, %arg5: memref<128x32xbf16, #tpu.memory_space<vmem>>, %arg6: memref<1x32xf32, #tpu.memory_space<vmem>>, %arg7: memref<96x32xbf16, #tpu.memory_space<vmem>>, %arg8: memref<1x32xf32, #tpu.memory_space<vmem>>, %arg9: memref<32x128xbf16, #tpu.memory_space<vmem>>, %arg10: memref<1x128xf32, #tpu.memory_space<vmem>>, %arg11: memref<1x128x128xf32, #tpu.memory_space<vmem>>) attributes {dimension_semantics = [#tpu.dimension_semantics<parallel>, #tpu.dimension_semantics<parallel>], iteration_bounds = array<i64: 2, 4>, scalar_prefetch = 0 : i64, scratch_operands = 0 : i64, tpu.core_type = #tpu.core_type<tc>, window_params = [{transform_indices = @transform_0, window_bounds = array<i64: 1, 128, 128>}, {transform_indices = @transform_1, window_bounds = array<i64: 1, 8, 128>}, {transform_indices = @transform_2, window_bounds = array<i64: 1, 8, 128>}, {pipeline_mode = #tpu.pipeline_mode<synchronous>, transform_indices = @transform_3, window_bounds = array<i64: 128, 32>}, {pipeline_mode = #tpu.pipeline_mode<synchronous>, transform_indices = @transform_4, window_bounds = array<i64: 1, 32>}, {pipeline_mode = #tpu.pipeline_mode<synchronous>, transform_indices = @transform_5, window_bounds = array<i64: 96, 32>}, {pipeline_mode = #tpu.pipeline_mode<synchronous>, transform_indices = @transform_6, window_bounds = array<i64: 1, 32>}, {pipeline_mode = #tpu.pipeline_mode<synchronous>, transform_indices = @transform_7, window_bounds = array<i64: 32, 128>}, {pipeline_mode = #tpu.pipeline_mode<synchronous>, transform_indices = @transform_8, window_bounds = array<i64: 1, 128>}, {transform_indices = @transform_9, window_bounds = array<i64: 1, 128, 128>}]} {
    %c0 = arith.constant 0 : index
    %c0_0 = arith.constant 0 : index
    %c0_1 = arith.constant 0 : index
    %0 = vector.load %arg2[%c0, %c0_0, %c0_1] : memref<1x128x128xf32, #tpu.memory_space<vmem>>, vector<1x128x128xf32>
    %1 = vector.shape_cast %0 : vector<1x128x128xf32> to vector<128x128xf32>
    %c0_2 = arith.constant 0 : index
    %c0_3 = arith.constant 0 : index
    %2 = vector.load %arg5[%c0_2, %c0_3] : memref<128x32xbf16, #tpu.memory_space<vmem>>, vector<128x32xbf16>
    %c0_4 = arith.constant 0 : index
    %c0_5 = arith.constant 0 : index
    %3 = vector.load %arg6[%c0_4, %c0_5] : memref<1x32xf32, #tpu.memory_space<vmem>>, vector<1x32xf32>
    %4 = arith.truncf %1 : vector<128x128xf32> to vector<128x128xbf16>
    %cst = arith.constant dense<0.000000e+00> : vector<128x32xf32>
    %5 = tpu.matmul %4, %2, %cst {dimension_numbers = #tpu.dot_dimension_numbers<[1], [0], [0], [1], [0, 0, 1, 1], [], []>} : vector<128x128xbf16>, vector<128x32xbf16>, vector<128x32xf32> -> vector<128x32xf32>
    %6 = vector.broadcast %3 : vector<1x32xf32> to vector<128x32xf32>
    %7 = arith.addf %5, %6 : vector<128x32xf32>
    %cst_6 = arith.constant 0.000000e+00 : f32
    %8 = vector.broadcast %cst_6 : f32 to vector<128x32xf32>
    %9 = arith.maximumf %7, %8 : vector<128x32xf32>
    %c0_7 = arith.constant 0 : index
    %c7 = arith.constant 7 : index
    %c0_8 = arith.constant 0 : index
    %10 = vector.load %arg3[%c0_7, %c7, %c0_8] : memref<1x8x128xf32, #tpu.memory_space<vmem>>, vector<1x1x128xf32>
    %11 = vector.shape_cast %10 : vector<1x1x128xf32> to vector<1x128xf32>
    %12 = arith.truncf %11 : vector<1x128xf32> to vector<1x128xbf16>
    %c0_9 = arith.constant 0 : index
    %c0_10 = arith.constant 0 : index
    %c0_11 = arith.constant 0 : index
    %13 = vector.load %arg4[%c0_9, %c0_10, %c0_11] : memref<1x8x128xf32, #tpu.memory_space<vmem>>, vector<1x1x128xf32>
    %14 = vector.shape_cast %13 : vector<1x1x128xf32> to vector<1x128xf32>
    %15 = arith.truncf %14 : vector<1x128xf32> to vector<1x128xbf16>
    %cst_12 = arith.constant dense<0.000000e+00> : vector<1x32xf32>
    %16 = tpu.matmul %12, %2, %cst_12 {dimension_numbers = #tpu.dot_dimension_numbers<[1], [0], [0], [1], [0, 0, 1, 1], [], []>} : vector<1x128xbf16>, vector<128x32xbf16>, vector<1x32xf32> -> vector<1x32xf32>
    %17 = arith.addf %16, %3 : vector<1x32xf32>
    %cst_13 = arith.constant 0.000000e+00 : f32
    %18 = vector.broadcast %cst_13 : f32 to vector<1x32xf32>
    %19 = arith.maximumf %17, %18 : vector<1x32xf32>
    %cst_14 = arith.constant dense<0.000000e+00> : vector<1x32xf32>
    %20 = tpu.matmul %15, %2, %cst_14 {dimension_numbers = #tpu.dot_dimension_numbers<[1], [0], [0], [1], [0, 0, 1, 1], [], []>} : vector<1x128xbf16>, vector<128x32xbf16>, vector<1x32xf32> -> vector<1x32xf32>
    %21 = arith.addf %20, %3 : vector<1x32xf32>
    %cst_15 = arith.constant 0.000000e+00 : f32
    %22 = vector.broadcast %cst_15 : f32 to vector<1x32xf32>
    %23 = arith.maximumf %21, %22 : vector<1x32xf32>
    %c0_i32 = arith.constant 0 : i32
    %24 = arith.cmpi sgt, %arg1, %c0_i32 : i32
    %25 = arith.extui %24 : i1 to i32
    %26 = arith.sitofp %25 : i32 to f32
    %27 = vector.broadcast %26 : f32 to vector<1x32xf32>
    %28 = arith.mulf %19, %27 : vector<1x32xf32>
    %c3_i32 = arith.constant 3 : i32
    %29 = arith.cmpi slt, %arg1, %c3_i32 : i32
    %30 = arith.extui %29 : i1 to i32
    %31 = arith.sitofp %30 : i32 to f32
    %32 = vector.broadcast %31 : f32 to vector<1x32xf32>
    %33 = arith.mulf %23, %32 : vector<1x32xf32>
    %34 = tpu.concatenate %28, %9, %33 in 0 : vector<1x32xf32>, vector<128x32xf32>, vector<1x32xf32> -> vector<130x32xf32>
    %35 = vector.extract_strided_slice %34 {offsets = [0, 0], sizes = [128, 32], strides = [1, 1]} : vector<130x32xf32> to vector<128x32xf32>
    %36 = vector.extract_strided_slice %34 {offsets = [1, 0], sizes = [128, 32], strides = [1, 1]} : vector<130x32xf32> to vector<128x32xf32>
    %37 = vector.extract_strided_slice %34 {offsets = [2, 0], sizes = [128, 32], strides = [1, 1]} : vector<130x32xf32> to vector<128x32xf32>
    %38 = tpu.concatenate %35, %36, %37 in 1 : vector<128x32xf32>, vector<128x32xf32>, vector<128x32xf32> -> vector<128x96xf32>
    %39 = arith.truncf %38 : vector<128x96xf32> to vector<128x96xbf16>
    %c0_16 = arith.constant 0 : index
    %c0_17 = arith.constant 0 : index
    %40 = vector.load %arg7[%c0_16, %c0_17] : memref<96x32xbf16, #tpu.memory_space<vmem>>, vector<96x32xbf16>
    %cst_18 = arith.constant dense<0.000000e+00> : vector<128x32xf32>
    %41 = tpu.matmul %39, %40, %cst_18 {dimension_numbers = #tpu.dot_dimension_numbers<[1], [0], [0], [1], [0, 0, 1, 1], [], []>} : vector<128x96xbf16>, vector<96x32xbf16>, vector<128x32xf32> -> vector<128x32xf32>
    %c0_19 = arith.constant 0 : index
    %c0_20 = arith.constant 0 : index
    %42 = vector.load %arg8[%c0_19, %c0_20] : memref<1x32xf32, #tpu.memory_space<vmem>>, vector<1x32xf32>
    %43 = vector.broadcast %42 : vector<1x32xf32> to vector<128x32xf32>
    %44 = arith.addf %41, %43 : vector<128x32xf32>
    %cst_21 = arith.constant 0.000000e+00 : f32
    %45 = vector.broadcast %cst_21 : f32 to vector<128x32xf32>
    %46 = arith.maximumf %44, %45 : vector<128x32xf32>
    %47 = arith.truncf %46 : vector<128x32xf32> to vector<128x32xbf16>
    %c0_22 = arith.constant 0 : index
    %c0_23 = arith.constant 0 : index
    %48 = vector.load %arg9[%c0_22, %c0_23] : memref<32x128xbf16, #tpu.memory_space<vmem>>, vector<32x128xbf16>
    %cst_24 = arith.constant dense<0.000000e+00> : vector<128x128xf32>
    %49 = tpu.matmul %47, %48, %cst_24 {dimension_numbers = #tpu.dot_dimension_numbers<[1], [0], [0], [1], [0, 0, 1, 1], [], []>} : vector<128x32xbf16>, vector<32x128xbf16>, vector<128x128xf32> -> vector<128x128xf32>
    %c0_25 = arith.constant 0 : index
    %c0_26 = arith.constant 0 : index
    %50 = vector.load %arg10[%c0_25, %c0_26] : memref<1x128xf32, #tpu.memory_space<vmem>>, vector<1x128xf32>
    %51 = vector.broadcast %50 : vector<1x128xf32> to vector<128x128xf32>
    %52 = arith.addf %49, %51 : vector<128x128xf32>
    %53 = arith.addf %52, %1 : vector<128x128xf32>
    %cst_27 = arith.constant 0.000000e+00 : f32
    %54 = vector.broadcast %cst_27 : f32 to vector<128x128xf32>
    %55 = arith.maximumf %53, %54 : vector<128x128xf32>
    %c0_28 = arith.constant 0 : index
    %c0_29 = arith.constant 0 : index
    %c0_30 = arith.constant 0 : index
    %56 = vector.load %arg11[%c0_28, %c0_29, %c0_30] : memref<1x128x128xf32, #tpu.memory_space<vmem>>, vector<1x128x128xf32>
    %57 = vector.shape_cast %56 : vector<1x128x128xf32> to vector<128x128xf32>
    %58 = vector.shape_cast %55 : vector<128x128xf32> to vector<1x128x128xf32>
    tpu.vector_store %arg11[%c0_28, %c0_29, %c0_30], %58 {strides = array<i32>} : memref<1x128x128xf32, #tpu.memory_space<vmem>>, vector<1x128x128xf32>,
    return
  }
  func.func @transform_0(%arg0: i32, %arg1: i32) -> (i32, i32, i32) {
    %c0_i32 = arith.constant 0 : i32
    %c0_i32_0 = arith.constant 0 : i32
    return %arg0, %arg1, %c0_i32 : i32, i32, i32
  }
  func.func @transform_1(%arg0: i32, %arg1: i32) -> (i32, i32, i32) {
    %c16_i32 = arith.constant 16 : i32
    %0 = arith.muli %arg1, %c16_i32 : i32
    %c1_i32 = arith.constant 1 : i32
    %1 = arith.subi %0, %c1_i32 : i32
    %c0_i32 = arith.constant 0 : i32
    %2 = arith.maxsi %1, %c0_i32 : i32
    %c0_i32_0 = arith.constant 0 : i32
    %c0_i32_1 = arith.constant 0 : i32
    return %arg0, %2, %c0_i32_0 : i32, i32, i32
  }
  func.func @transform_2(%arg0: i32, %arg1: i32) -> (i32, i32, i32) {
    %c1_i32 = arith.constant 1 : i32
    %0 = arith.addi %arg1, %c1_i32 : i32
    %c16_i32 = arith.constant 16 : i32
    %1 = arith.muli %0, %c16_i32 : i32
    %c63_i32 = arith.constant 63 : i32
    %2 = arith.minsi %1, %c63_i32 : i32
    %c0_i32 = arith.constant 0 : i32
    %c0_i32_0 = arith.constant 0 : i32
    return %arg0, %2, %c0_i32 : i32, i32, i32
  }
  func.func @transform_3(%arg0: i32, %arg1: i32) -> (i32, i32) {
    %c0_i32 = arith.constant 0 : i32
    %c0_i32_0 = arith.constant 0 : i32
    %c0_i32_1 = arith.constant 0 : i32
    return %c0_i32, %c0_i32_0 : i32, i32
  }
  func.func @transform_4(%arg0: i32, %arg1: i32) -> (i32, i32) {
    %c0_i32 = arith.constant 0 : i32
    %c0_i32_0 = arith.constant 0 : i32
    %c0_i32_1 = arith.constant 0 : i32
    return %c0_i32, %c0_i32_0 : i32, i32
  }
  func.func @transform_5(%arg0: i32, %arg1: i32) -> (i32, i32) {
    %c0_i32 = arith.constant 0 : i32
    %c0_i32_0 = arith.constant 0 : i32
    %c0_i32_1 = arith.constant 0 : i32
    return %c0_i32, %c0_i32_0 : i32, i32
  }
  func.func @transform_6(%arg0: i32, %arg1: i32) -> (i32, i32) {
    %c0_i32 = arith.constant 0 : i32
    %c0_i32_0 = arith.constant 0 : i32
    %c0_i32_1 = arith.constant 0 : i32
    return %c0_i32, %c0_i32_0 : i32, i32
  }
  func.func @transform_7(%arg0: i32, %arg1: i32) -> (i32, i32) {
    %c0_i32 = arith.constant 0 : i32
    %c0_i32_0 = arith.constant 0 : i32
    %c0_i32_1 = arith.constant 0 : i32
    return %c0_i32, %c0_i32_0 : i32, i32
  }
  func.func @transform_8(%arg0: i32, %arg1: i32) -> (i32, i32) {
    %c0_i32 = arith.constant 0 : i32
    %c0_i32_0 = arith.constant 0 : i32
    %c0_i32_1 = arith.constant 0 : i32
    return %c0_i32, %c0_i32_0 : i32, i32
  }
  func.func @transform_9(%arg0: i32, %arg1: i32) -> (i32, i32, i32) {
    %c0_i32 = arith.constant 0 : i32
    %c0_i32_0 = arith.constant 0 : i32
    return %arg0, %arg1, %c0_i32 : i32, i32, i32
  }
}

</mosaic_0001>

<llo_original>
// kernel: tpu_custom_call.1
$region0: #{tpu_custom_call.1}
  #allocation0 [shape = 'u32[]', space=smem, size = 0x4, offset = 0x4, fixed_abs, tag = 'smem constant byte address 0x4 - core index']
  #allocation1 [shape = 'u32[144,128]{1,0:T(1,128)}', space=vmem, size = 0x12000, scoped, tag = 'internal scratch']
  %s0 = inlined_call_operand.hbm [shape: f32[2,512,128], index: 0, kind: input, shape index: {}]
  %s1 = inlined_call_operand.hbm [shape: f32[2,512,128], index: 1, kind: input, shape index: {}]
  %s2 = inlined_call_operand.hbm [shape: f32[2,512,128], index: 2, kind: input, shape index: {}]
  %s3 = inlined_call_operand.vmem [shape: bf16[128,32], index: 3, kind: input, shape index: {}]
  %s4 = inlined_call_operand.vmem [shape: f32[1,32], index: 4, kind: input, shape index: {}]
  %s5 = inlined_call_operand.vmem [shape: bf16[96,32], index: 5, kind: input, shape index: {}]
  %s6 = inlined_call_operand.vmem [shape: f32[1,32], index: 6, kind: input, shape index: {}]
  %s7 = inlined_call_operand.vmem [shape: bf16[32,128], index: 7, kind: input, shape index: {}]
  %s8 = inlined_call_operand.vmem [shape: f32[1,128], index: 8, kind: input, shape index: {}]
  %s9 = inlined_call_operand.hbm [shape: f32[2,512,128], index: 9, kind: output, shape index: {}]
  %s10 = sld [smem:[#allocation0]]
  $region81: #{tpu_custom_call.1} parent=0
    _
  %s12 = ssub.s32 1, %s10
  %s13 = scalar_select 0, %s12, %s10
  $region1: #{tpu_custom_call.1} parent=0
    #allocation2 [shape = 'u8[131072]{0}', space=vmem, size = 0x20000, scoped, tag = 'input window, operand 0']
    #allocation3 [shape = 's32[2]{0}', space=sflag, size = 0x8, scoped, tag = 'scoped memory for tpu_custom_call.1']
    #allocation4 [shape = 's32[2]{0}', space=sflag, size = 0x8, scoped, tag = 'scoped memory for tpu_custom_call.1']
    #allocation5 [shape = 'u8[8192]{0}', space=vmem, size = 0x2000, scoped, tag = 'input window, operand 1']
    #allocation6 [shape = 's32[2]{0}', space=sflag, size = 0x8, scoped, tag = 'scoped memory for tpu_custom_call.1']
    #allocation7 [shape = 'u8[8192]{0}', space=vmem, size = 0x2000, scoped, tag = 'input window, operand 2']
    #allocation8 [shape = 'u8[131072]{0}', space=vmem, size = 0x20000, scoped, tag = 'output window, operand 0']
    %14 = vsyncpa [#allocation3], 0
    %s15 = scalar_lea.sflag [#allocation3], 1
    %16 = vsyncpa %s15, 0
    %17 = vsyncpa [#allocation6], 0
    %s18 = scalar_lea.sflag [#allocation6], 1
    %19 = vsyncpa %s18, 0
    %20 = vsyncpa [#allocation4], 0
    %s21 = scalar_lea.sflag [#allocation4], 1
    %22 = vsyncpa %s21, 0
    loop: start=0, step=1, limit=10
    $region2: #{tpu_custom_call.1} parent=1 // loop_pre_header
      _
    $region3: #{tpu_custom_call.1} parent=1 // loop_header
      %s24 = sphi 0, %s28
      %p25 = scmp.ge.s32.totalorder %s24, 10
      %s31 = sphi 0, %s43
      %s32 = sphi 0, %s39
      %s33 = sphi 0, %s31
      %s34 = sphi 0, %s32
      %s35 = sphi 0, %s33
      %s36 = sphi 0, %s34
      %s48 = sphi 0, %s50
      %s51 = sphi 0, %s48
      %s52 = sphi 0, %s51
      %s68 = sphi 0, %s52
      %s84 = sphi 0, %s86
      %s87 = sphi 0, %s84
      %s88 = sphi 0, %s87
      %s104 = sphi 0, %s88
      %s120 = sphi 0, %s122
      %s123 = sphi 0, %s120
      %s124 = sphi 0, %s123
      %s140 = sphi 0, %s124
      %s144 = sphi 0, %s144
      %s146 = sphi 0, %s144
      %s147 = sphi 0, %s146
      %s161 = sphi 0, %s147
      %s165 = sphi 0, %s165
      %s167 = sphi 0, %s165
      %s168 = sphi 0, %s167
      %s182 = sphi 0, %s168
      %s186 = sphi 0, %s186
      %s188 = sphi 0, %s186
      %s189 = sphi 0, %s188
      %s203 = sphi 0, %s189
      %s207 = sphi 0, %s207
      %s209 = sphi 0, %s207
      %s210 = sphi 0, %s209
      %s224 = sphi 0, %s210
      %s228 = sphi 0, %s228
      %s230 = sphi 0, %s228
      %s231 = sphi 0, %s230
      %s245 = sphi 0, %s231
      %s249 = sphi 0, %s249
      %s251 = sphi 0, %s249
      %s252 = sphi 0, %s251
      %s266 = sphi 0, %s252
      %s274 = sphi 0, %s276
      %s277 = sphi 0, %s274
      %s278 = sphi 0, %s277
      %s294 = sphi 0, %s278
    $region4: #{tpu_custom_call.1} parent=1 // loop_header_branch
      %27 = sbr.rel (%p25) target = $region8
    $region5: #{tpu_custom_call.1} parent=1 // loop_body
      %s29 = ssub.s32 %s24, 1
      %s30 = ssub.s32 %s24, 2
      %s37 = sadd.s32 1, %s32
      %p38 = scmp.ge.s32.totalorder %s37, 4
      %s39 = scalar_select %p38, 0, %s37
      %s40 = sadd.s32 1, %s31
      %s41 = scalar_select %p38, %s40, %s31
      %p42 = scmp.ge.s32.totalorder %s41, 2
      %s43 = scalar_select %p42, 0, %s41
      %s44 = ssub.s32 %s31, %s43
      %s45 = ssub.s32 %s32, %s39
      %s46 = sor.u32 %s44, %s45
      %p47 = scmp.eq.s32.totalorder %s46, 0
      %s49 = sadd.s32 %s48, 1
      %s50 = scalar_select %p47, %s48, %s49
      %p53 = pneg %p47
      %p54 = scmp.eq.s32.totalorder %s24, 7
      %p55 = por %p53, %p54
      %p56 = scmp.ne.s32.totalorder %s48, %s51
      %p57 = scmp.eq.s32.totalorder %s24, 0
      %p58 = por %p56, %p57
      %p59 = scmp.ne.s32.totalorder %s48, %s51
      %p60 = scmp.eq.s32.totalorder %s29, 7
      %p61 = por %p59, %p60
      %p62 = scmp.ne.s32.totalorder %s51, %s52
      %p63 = scmp.eq.s32.totalorder %s29, 0
      %p64 = por %p62, %p63
      %p65 = scmp.ne.s32.totalorder %s51, %s52
      %p66 = scmp.eq.s32.totalorder %s30, 7
      %p67 = por %p65, %p66
      %p69 = scmp.ne.s32.totalorder %s52, %s68
      %p70 = scmp.eq.s32.totalorder %s30, 0
      %p71 = por %p69, %p70
      %s72 = smul.u32 %s32, 16
      %s73 = ssub.s32 %s72, 1
      %p74 = scmp.gt.s32.totalorder %s73, 0
      %s75 = scalar_select %p74, %s73, 0
      %s76 = smul.u32 %s39, 16
      %s77 = ssub.s32 %s76, 1
      %p78 = scmp.gt.s32.totalorder %s77, 0
      %s79 = scalar_select %p78, %s77, 0
      %s80 = ssub.s32 %s31, %s43
      %s81 = ssub.s32 %s75, %s79
      %s82 = sor.u32 %s80, %s81
      %p83 = scmp.eq.s32.totalorder %s82, 0
      %s85 = sadd.s32 %s84, 1
      %s86 = scalar_select %p83, %s84, %s85
      %p89 = pneg %p83
      %p90 = scmp.eq.s32.totalorder %s24, 7
      %p91 = por %p89, %p90
      %p92 = scmp.ne.s32.totalorder %s84, %s87
      %p93 = scmp.eq.s32.totalorder %s24, 0
      %p94 = por %p92, %p93
      %p95 = scmp.ne.s32.totalorder %s84, %s87
      %p96 = scmp.eq.s32.totalorder %s29, 7
      %p97 = por %p95, %p96
      %p98 = scmp.ne.s32.totalorder %s87, %s88
      %p99 = scmp.eq.s32.totalorder %s29, 0
      %p100 = por %p98, %p99
      %p101 = scmp.ne.s32.totalorder %s87, %s88
      %p102 = scmp.eq.s32.totalorder %s30, 7
      %p103 = por %p101, %p102
      %p105 = scmp.ne.s32.totalorder %s88, %s104
      %p106 = scmp.eq.s32.totalorder %s30, 0
      %p107 = por %p105, %p106
      %s108 = sadd.s32 %s32, 1
      %s109 = smul.u32 %s108, 16
      %p110 = scmp.lt.s32.totalorder %s109, 63
      %s111 = scalar_select %p110, %s109, 63
      %s112 = sadd.s32 %s39, 1
      %s113 = smul.u32 %s112, 16
      %p114 = scmp.lt.s32.totalorder %s113, 63
      %s115 = scalar_select %p114, %s113, 63
      %s116 = ssub.s32 %s31, %s43
      %s117 = ssub.s32 %s111, %s115
      %s118 = sor.u32 %s116, %s117
      %p119 = scmp.eq.s32.totalorder %s118, 0
      %s121 = sadd.s32 %s120, 1
      %s122 = scalar_select %p119, %s120, %s121
      %p125 = pneg %p119
      %p126 = scmp.eq.s32.totalorder %s24, 7
      %p127 = por %p125, %p126
      %p128 = scmp.ne.s32.totalorder %s120, %s123
      %p129 = scmp.eq.s32.totalorder %s24, 0
      %p130 = por %p128, %p129
      %p131 = scmp.ne.s32.totalorder %s120, %s123
      %p132 = scmp.eq.s32.totalorder %s29, 7
      %p133 = por %p131, %p132
      %p134 = scmp.ne.s32.totalorder %s123, %s124
      %p135 = scmp.eq.s32.totalorder %s29, 0
      %p136 = por %p134, %p135
      %p137 = scmp.ne.s32.totalorder %s123, %s124
      %p138 = scmp.eq.s32.totalorder %s30, 7
      %p139 = por %p137, %p138
      %p141 = scmp.ne.s32.totalorder %s124, %s140
      %p142 = scmp.eq.s32.totalorder %s30, 0
      %p143 = por %p141, %p142
      %s145 = sadd.s32 %s144, 1
      %p148 = scmp.eq.s32.totalorder %s24, 7
      %p149 = scmp.ne.s32.totalorder %s144, %s146
      %p150 = scmp.eq.s32.totalorder %s24, 0
      %p151 = por %p149, %p150
      %p152 = scmp.ne.s32.totalorder %s144, %s146
      %p153 = scmp.eq.s32.totalorder %s29, 7
      %p154 = por %p152, %p153
      %p155 = scmp.ne.s32.totalorder %s146, %s147
      %p156 = scmp.eq.s32.totalorder %s29, 0
      %p157 = por %p155, %p156
      %p158 = scmp.ne.s32.totalorder %s146, %s147
      %p159 = scmp.eq.s32.totalorder %s30, 7
      %p160 = por %p158, %p159
      %p162 = scmp.ne.s32.totalorder %s147, %s161
      %p163 = scmp.eq.s32.totalorder %s30, 0
      %p164 = por %p162, %p163
      %s166 = sadd.s32 %s165, 1
      %p169 = scmp.eq.s32.totalorder %s24, 7
      %p170 = scmp.ne.s32.totalorder %s165, %s167
      %p171 = scmp.eq.s32.totalorder %s24, 0
      %p172 = por %p170, %p171
      %p173 = scmp.ne.s32.totalorder %s165, %s167
      %p174 = scmp.eq.s32.totalorder %s29, 7
      %p175 = por %p173, %p174
      %p176 = scmp.ne.s32.totalorder %s167, %s168
      %p177 = scmp.eq.s32.totalorder %s29, 0
      %p178 = por %p176, %p177
      %p179 = scmp.ne.s32.totalorder %s167, %s168
      %p180 = scmp.eq.s32.totalorder %s30, 7
      %p181 = por %p179, %p180
      %p183 = scmp.ne.s32.totalorder %s168, %s182
      %p184 = scmp.eq.s32.totalorder %s30, 0
      %p185 = por %p183, %p184
      %s187 = sadd.s32 %s186, 1
      %p190 = scmp.eq.s32.totalorder %s24, 7
      %p191 = scmp.ne.s32.totalorder %s186, %s188
      %p192 = scmp.eq.s32.totalorder %s24, 0
      %p193 = por %p191, %p192
      %p194 = scmp.ne.s32.totalorder %s186, %s188
      %p195 = scmp.eq.s32.totalorder %s29, 7
      %p196 = por %p194, %p195
      %p197 = scmp.ne.s32.totalorder %s188, %s189
      %p198 = scmp.eq.s32.totalorder %s29, 0
      %p199 = por %p197, %p198
      %p200 = scmp.ne.s32.totalorder %s188, %s189
      %p201 = scmp.eq.s32.totalorder %s30, 7
      %p202 = por %p200, %p201
      %p204 = scmp.ne.s32.totalorder %s189, %s203
      %p205 = scmp.eq.s32.totalorder %s30, 0
      %p206 = por %p204, %p205
      %s208 = sadd.s32 %s207, 1
      %p211 = scmp.eq.s32.totalorder %s24, 7
      %p212 = scmp.ne.s32.totalorder %s207, %s209
      %p213 = scmp.eq.s32.totalorder %s24, 0
      %p214 = por %p212, %p213
      %p215 = scmp.ne.s32.totalorder %s207, %s209
      %p216 = scmp.eq.s32.totalorder %s29, 7
      %p217 = por %p215, %p216
      %p218 = scmp.ne.s32.totalorder %s209, %s210
      %p219 = scmp.eq.s32.totalorder %s29, 0
      %p220 = por %p218, %p219
      %p221 = scmp.ne.s32.totalorder %s209, %s210
      %p222 = scmp.eq.s32.totalorder %s30, 7
      %p223 = por %p221, %p222
      %p225 = scmp.ne.s32.totalorder %s210, %s224
      %p226 = scmp.eq.s32.totalorder %s30, 0
      %p227 = por %p225, %p226
      %s229 = sadd.s32 %s228, 1
      %p232 = scmp.eq.s32.totalorder %s24, 7
      %p233 = scmp.ne.s32.totalorder %s228, %s230
      %p234 = scmp.eq.s32.totalorder %s24, 0
      %p235 = por %p233, %p234
      %p236 = scmp.ne.s32.totalorder %s228, %s230
      %p237 = scmp.eq.s32.totalorder %s29, 7
      %p238 = por %p236, %p237
      %p239 = scmp.ne.s32.totalorder %s230, %s231
      %p240 = scmp.eq.s32.totalorder %s29, 0
      %p241 = por %p239, %p240
      %p242 = scmp.ne.s32.totalorder %s230, %s231
      %p243 = scmp.eq.s32.totalorder %s30, 7
      %p244 = por %p242, %p243
      %p246 = scmp.ne.s32.totalorder %s231, %s245
      %p247 = scmp.eq.s32.totalorder %s30, 0
      %p248 = por %p246, %p247
      %s250 = sadd.s32 %s249, 1
      %p253 = scmp.eq.s32.totalorder %s24, 7
      %p254 = scmp.ne.s32.totalorder %s249, %s251
      %p255 = scmp.eq.s32.totalorder %s24, 0
      %p256 = por %p254, %p255
      %p257 = scmp.ne.s32.totalorder %s249, %s251
      %p258 = scmp.eq.s32.totalorder %s29, 7
      %p259 = por %p257, %p258
      %p260 = scmp.ne.s32.totalorder %s251, %s252
      %p261 = scmp.eq.s32.totalorder %s29, 0
      %p262 = por %p260, %p261
      %p263 = scmp.ne.s32.totalorder %s251, %s252
      %p264 = scmp.eq.s32.totalorder %s30, 7
      %p265 = por %p263, %p264
      %p267 = scmp.ne.s32.totalorder %s252, %s266
      %p268 = scmp.eq.s32.totalorder %s30, 0
      %p269 = por %p267, %p268
      %s270 = ssub.s32 %s31, %s43
      %s271 = ssub.s32 %s32, %s39
      %s272 = sor.u32 %s270, %s271
      %p273 = scmp.eq.s32.totalorder %s272, 0
      %s275 = sadd.s32 %s274, 1
      %s276 = scalar_select %p273, %s274, %s275
      %p279 = pneg %p273
      %p280 = scmp.eq.s32.totalorder %s24, 7
      %p281 = por %p279, %p280
      %p282 = scmp.ne.s32.totalorder %s274, %s277
      %p283 = scmp.eq.s32.totalorder %s24, 0
      %p284 = por %p282, %p283
      %p285 = scmp.ne.s32.totalorder %s274, %s277
      %p286 = scmp.eq.s32.totalorder %s29, 7
      %p287 = por %p285, %p286
      %p288 = scmp.ne.s32.totalorder %s277, %s278
      %p289 = scmp.eq.s32.totalorder %s29, 0
      %p290 = por %p288, %p289
      %p291 = scmp.ne.s32.totalorder %s277, %s278
      %p292 = scmp.eq.s32.totalorder %s30, 7
      %p293 = por %p291, %p292
      %p295 = scmp.ne.s32.totalorder %s278, %s294
      %p296 = scmp.eq.s32.totalorder %s30, 0
      %p297 = por %p295, %p296
      %p298 = scmp.le.s32.totalorder 1, %s24
      %p299 = scmp.lt.s32.totalorder %s24, 9
      %p300 = pnand %p298, %p299
      %p301 = pneg %p300
      // Predicated region
      $region9: #{tpu_custom_call.1} parent=5 // pred_check
        _
      $region10: #{tpu_custom_call.1} parent=5 // pred_check_branch
        %303 = sbr.rel (%p300) target = $region12
      $region11: #{tpu_custom_call.1} parent=5 // pred_region
        %s304 = ssub.s32 %s24, 1
        // Predicated region
        $region13: #{tpu_custom_call.1} parent=11 // pred_check
          %p305 = pneg %p157
        $region14: #{tpu_custom_call.1} parent=11 // pred_check_branch
          %307 = sbr.rel (%p305) target = $region16
        $region15: #{tpu_custom_call.1} parent=11 // pred_region
          _
        $region16: #{tpu_custom_call.1} parent=11 // pred_fallthru
          _
        // Predicated region
        $region17: #{tpu_custom_call.1} parent=11 // pred_check
          %p308 = pneg %p178
        $region18: #{tpu_custom_call.1} parent=11 // pred_check_branch
          %310 = sbr.rel (%p308) target = $region20
        $region19: #{tpu_custom_call.1} parent=11 // pred_region
          _
        $region20: #{tpu_custom_call.1} parent=11 // pred_fallthru
          _
        // Predicated region
        $region21: #{tpu_custom_call.1} parent=11 // pred_check
          %p311 = pneg %p199
        $region22: #{tpu_custom_call.1} parent=11 // pred_check_branch
          %313 = sbr.rel (%p311) target = $region24
        $region23: #{tpu_custom_call.1} parent=11 // pred_region
          _
        $region24: #{tpu_custom_call.1} parent=11 // pred_fallthru
          _
        // Predicated region
        $region25: #{tpu_custom_call.1} parent=11 // pred_check
          %p314 = pneg %p220
        $region26: #{tpu_custom_call.1} parent=11 // pred_check_branch
          %316 = sbr.rel (%p314) target = $region28
        $region27: #{tpu_custom_call.1} parent=11 // pred_region
          _
        $region28: #{tpu_custom_call.1} parent=11 // pred_fallthru
          _
        // Predicated region
        $region29: #{tpu_custom_call.1} parent=11 // pred_check
          %p317 = pneg %p241
        $region30: #{tpu_custom_call.1} parent=11 // pred_check_branch
          %319 = sbr.rel (%p317) target = $region32
        $region31: #{tpu_custom_call.1} parent=11 // pred_region
          _
        $region32: #{tpu_custom_call.1} parent=11 // pred_fallthru
          _
        // Predicated region
        $region33: #{tpu_custom_call.1} parent=11 // pred_check
          %p320 = pneg %p262
        $region34: #{tpu_custom_call.1} parent=11 // pred_check_branch
          %322 = sbr.rel (%p320) target = $region36
        $region35: #{tpu_custom_call.1} parent=11 // pred_region
          _
        $region36: #{tpu_custom_call.1} parent=11 // pred_fallthru
          _
      $region12: #{tpu_custom_call.1} parent=5 // pred_fallthru
        _
      %p323 = scmp.lt.s32.totalorder %s24, 8
      // Predicated region
      $region37: #{tpu_custom_call.1} parent=5 // pred_check
        %p324 = pneg %p323
      $region38: #{tpu_custom_call.1} parent=5 // pred_check_branch
        %326 = sbr.rel (%p324) target = $region40
      $region39: #{tpu_custom_call.1} parent=5 // pred_region
        // Predicated region
        $region41: #{tpu_custom_call.1} parent=39 // pred_check
          %p327 = pneg %p58
        $region42: #{tpu_custom_call.1} parent=39 // pred_check_branch
          %329 = sbr.rel (%p327) target = $region44
        $region43: #{tpu_custom_call.1} parent=39 // pred_region
          %s330 = sand.u32 %s48, 1
          %s331 = scalar_lea.sflag [#allocation3], %s330
          %s332 = sand.u32 %s48, 1
          %s333 = smul.addr %s332, 128
          %s334 = scalar_lea.vmem [#allocation2], %s333
          %s335 = smul.u32 16, %s32
          %s337 = ssub.s32 2048, 2048
          %338 = vsyncadd %s331, %s337
          %s339 = smul.addr %s31, 64
          %s340 = sadd.s32 %s335, %s339
          %s341 = smul.addr %s340, 128
          %s342 = scalar_lea.hbm %s0, %s341
          %s343 = sshll.u32 %s334, 4
          %s344 = int_to_ptr.vmem [resolvable:$true] %s343
          %349 = dma.hbm_to_vmem [thread:$0]  %s342, 2048, %s344, %s331, 128, 128, 8
        $region44: #{tpu_custom_call.1} parent=39 // pred_fallthru
          _
        // Predicated region
        $region45: #{tpu_custom_call.1} parent=39 // pred_check
          %p350 = pneg %p94
        $region46: #{tpu_custom_call.1} parent=39 // pred_check_branch
          %352 = sbr.rel (%p350) target = $region48
        $region47: #{tpu_custom_call.1} parent=39 // pred_region
          %s353 = sand.u32 %s24, 1
          %s354 = scalar_lea.sflag [#allocation6], %s353
          %s355 = sand.u32 %s84, 1
          %s356 = smul.addr %s355, 8
          %s357 = scalar_lea.vmem [#allocation5], %s356
          %s358 = smul.u32 %s32, 16
          %s359 = ssub.s32 %s358, 1
          %p360 = scmp.gt.s32.totalorder %s359, 0
          %s361 = scalar_select %p360, %s359, 0
          %s363 = ssub.s32 128, 128
          %364 = vsyncadd %s354, %s363
          %s365 = smul.addr %s31, 64
          %s366 = sadd.s32 %s361, %s365
          %s367 = smul.addr %s366, 128
          %s368 = scalar_lea.hbm %s1, %s367
          %s370 = sshll.u32 %s357, 4
          %s371 = int_to_ptr.vmem [resolvable:$true] %s370
          %373 = dma.hbm_to_vmem [thread:$0]  %s368, 128, %s371, %s354
        $region48: #{tpu_custom_call.1} parent=39 // pred_fallthru
          _
        // Predicated region
        $region49: #{tpu_custom_call.1} parent=39 // pred_check
          %p374 = pneg %p130
        $region50: #{tpu_custom_call.1} parent=39 // pred_check_branch
          %376 = sbr.rel (%p374) target = $region52
        $region51: #{tpu_custom_call.1} parent=39 // pred_region
          %s377 = sand.u32 %s24, 1
          %s378 = scalar_lea.sflag [#allocation6], %s377
          %s379 = sand.u32 %s120, 1
          %s380 = smul.addr %s379, 8
          %s381 = scalar_lea.vmem [#allocation7], %s380
          %s382 = sadd.s32 %s32, 1
          %s383 = smul.u32 %s382, 16
          %p384 = scmp.lt.s32.totalorder %s383, 63
          %s385 = scalar_select %p384, %s383, 63
          %s387 = ssub.s32 128, 128
          %388 = vsyncadd %s378, %s387
          %s389 = smul.addr %s31, 64
          %s390 = sadd.s32 %s385, %s389
          %s391 = smul.addr %s390, 128
          %s392 = scalar_lea.hbm %s2, %s391
          %s394 = sshll.u32 %s381, 4
          %s395 = int_to_ptr.vmem [resolvable:$true] %s394
          %397 = dma.hbm_to_vmem [thread:$0]  %s392, 128, %s395, %s378
        $region52: #{tpu_custom_call.1} parent=39 // pred_fallthru
          _
      $region40: #{tpu_custom_call.1} parent=5 // pred_fallthru
        _
      %p398 = scmp.le.s32.totalorder 1, %s24
      %p399 = scmp.lt.s32.totalorder %s24, 9
      %p400 = pnand %p398, %p399
      %p401 = pneg %p400
      // Predicated region
      $region53: #{tpu_custom_call.1} parent=5 // pred_check
        _
      $region54: #{tpu_custom_call.1} parent=5 // pred_check_branch
        %403 = sbr.rel (%p400) target = $region56
      $region55: #{tpu_custom_call.1} parent=5 // pred_region
        %s404 = ssub.s32 %s24, 1
        %s405 = sand.u32 %s51, 1
        %s406 = scalar_lea.sflag [#allocation3], %s405
        %s407 = sand.u32 %s51, 1
        %s408 = smul.addr %s407, 128
        %s409 = scalar_lea.vmem [#allocation2], %s408
        // Predicated region
        $region57: #{tpu_custom_call.1} parent=55 // pred_check
          %p410 = pneg %p64
        $region58: #{tpu_custom_call.1} parent=55 // pred_check_branch
          %412 = sbr.rel (%p410) target = $region60
        $region59: #{tpu_custom_call.1} parent=55 // pred_region
          %413 = dma.done %s406, 2048
        $region60: #{tpu_custom_call.1} parent=55 // pred_fallthru
          _
        %s414 = sand.u32 %s29, 1
        %s415 = scalar_lea.sflag [#allocation6], %s414
        %s416 = sand.u32 %s87, 1
        %s417 = smul.addr %s416, 8
        %s418 = scalar_lea.vmem [#allocation5], %s417
        // Predicated region
        $region61: #{tpu_custom_call.1} parent=55 // pred_check
          %p419 = pneg %p100
        $region62: #{tpu_custom_call.1} parent=55 // pred_check_branch
          %421 = sbr.rel (%p419) target = $region64
        $region63: #{tpu_custom_call.1} parent=55 // pred_region
          %422 = dma.done %s415, 128
        $region64: #{tpu_custom_call.1} parent=55 // pred_fallthru
          _
        %s423 = sand.u32 %s29, 1
        %s424 = scalar_lea.sflag [#allocation6], %s423
        %s425 = sand.u32 %s123, 1
        %s426 = smul.addr %s425, 8
        %s427 = scalar_lea.vmem [#allocation7], %s426
        // Predicated region
        $region65: #{tpu_custom_call.1} parent=55 // pred_check
          %p428 = pneg %p136
        $region66: #{tpu_custom_call.1} parent=55 // pred_check_branch
          %430 = sbr.rel (%p428) target = $region68
        $region67: #{tpu_custom_call.1} parent=55 // pred_region
          %431 = dma.done %s424, 128
        $region68: #{tpu_custom_call.1} parent=55 // pred_fallthru
          _
        %s432 = sand.u32 %s51, 1
        %s433 = scalar_lea.sflag [#allocation3], %s432
        %s434 = sand.u32 %s51, 1
        %s435 = smul.addr %s434, 128
        %s436 = scalar_lea.vmem [#allocation2], %s435
        %p437 = pneg %p64
        %p438 = pneg %p61
        %s439 = sand.u32 %s29, 1
        %s440 = scalar_lea.sflag [#allocation6], %s439
        %s441 = sand.u32 %s87, 1
        %s442 = smul.addr %s441, 8
        %s443 = scalar_lea.vmem [#allocation5], %s442
        %p444 = pneg %p100
        %p445 = pneg %p97
        %s446 = sand.u32 %s29, 1
        %s447 = scalar_lea.sflag [#allocation6], %s446
        %s448 = sand.u32 %s123, 1
        %s449 = smul.addr %s448, 8
        %s450 = scalar_lea.vmem [#allocation7], %s449
        %p451 = pneg %p136
        %p452 = pneg %p133
        %p453 = pneg %p157
        %p454 = pneg %p154
        %p455 = pneg %p178
        %p456 = pneg %p175
        %p457 = pneg %p199
        %p458 = pneg %p196
        %p459 = pneg %p220
        %p460 = pneg %p217
        %p461 = pneg %p241
        %p462 = pneg %p238
        %p463 = pneg %p262
        %p464 = pneg %p259
        %p465 = pneg %p290
        %p466 = pneg %p287
        %s467 = sand.u32 %s277, 1
        %s468 = scalar_lea.sflag [#allocation4], %s467
        %s469 = sand.u32 %s277, 1
        %s470 = smul.addr %s469, 128
        %s471 = scalar_lea.vmem [#allocation8], %s470
        %s472 = smul.u32 16, %s34
        %s473 = smul.u32 %s34, 16
        %s474 = ssub.s32 %s473, 1
        %p475 = scmp.gt.s32.totalorder %s474, 0
        %s476 = scalar_select %p475, %s474, 0
        %s477 = sadd.s32 %s34, 1
        %s478 = smul.u32 %s477, 16
        %p479 = scmp.lt.s32.totalorder %s478, 63
        %s480 = scalar_select %p479, %s478, 63
        %s481 = smul.u32 16, %s34
        %v483 = vld [vmem:[%s409] sm:$0xff]
        %v484 = vld [vmem:[%s409 + $0x8] sm:$0xff]
        %v485 = vld [vmem:[%s409 + $0x10] sm:$0xff]
        %v486 = vld [vmem:[%s409 + $0x18] sm:$0xff]
        %v487 = vld [vmem:[%s409 + $0x20] sm:$0xff]
        %v488 = vld [vmem:[%s409 + $0x28] sm:$0xff]
        %v489 = vld [vmem:[%s409 + $0x30] sm:$0xff]
        %v490 = vld [vmem:[%s409 + $0x38] sm:$0xff]
        %v491 = vld [vmem:[%s409 + $0x40] sm:$0xff]
        %v492 = vld [vmem:[%s409 + $0x48] sm:$0xff]
        %v493 = vld [vmem:[%s409 + $0x50] sm:$0xff]
        %v494 = vld [vmem:[%s409 + $0x58] sm:$0xff]
        %v495 = vld [vmem:[%s409 + $0x60] sm:$0xff]
        %v496 = vld [vmem:[%s409 + $0x68] sm:$0xff]
        %v497 = vld [vmem:[%s409 + $0x70] sm:$0xff]
        %v498 = vld [vmem:[%s409 + $0x78] sm:$0xff]
        %v499 = vld [vmem:[%s3] sm:$0xf]
        %v500 = vld [vmem:[%s3 + $0x4] sm:$0xf]
        %v501 = vld [vmem:[%s3 + $0x8] sm:$0xf]
        %v502 = vld [vmem:[%s3 + $0xc] sm:$0xf]
        %v503 = vld [vmem:[%s3 + $0x10] sm:$0xf]
        %v504 = vld [vmem:[%s3 + $0x14] sm:$0xf]
        %v505 = vld [vmem:[%s3 + $0x18] sm:$0xf]
        %v506 = vld [vmem:[%s3 + $0x1c] sm:$0xf]
        %v507 = vld [vmem:[%s3 + $0x20] sm:$0xf]
        %v508 = vld [vmem:[%s3 + $0x24] sm:$0xf]
        %v509 = vld [vmem:[%s3 + $0x28] sm:$0xf]
        %v510 = vld [vmem:[%s3 + $0x2c] sm:$0xf]
        %v511 = vld [vmem:[%s3 + $0x30] sm:$0xf]
        %v512 = vld [vmem:[%s3 + $0x34] sm:$0xf]
        %v513 = vld [vmem:[%s3 + $0x38] sm:$0xf]
        %v514 = vld [vmem:[%s3 + $0x3c] sm:$0xf]
        %v515 = vld [vmem:[%s4] sm:$0x1]
        %v516 = vpack.c.bf16 %v484, %v483
        %v517 = vpack.c.bf16 %v486, %v485
        %v518 = vpack.c.bf16 %v488, %v487
        %v519 = vpack.c.bf16 %v490, %v489
        %v520 = vpack.c.bf16 %v492, %v491
        %v521 = vpack.c.bf16 %v494, %v493
        %v522 = vpack.c.bf16 %v496, %v495
        %v523 = vpack.c.bf16 %v498, %v497
        %v525 = vlaneseq
        %v526 = vshrl.u32 %v525, 7
        %v527 = vsub.s32 0, %v526
        %v528 = vrot.slane %v515, %v527
        %v546 = vunpack.c.l.b16 %v499
        %v547 = vunpack.c.l.b16 %v500
        %v548 = vunpack.c.l.b16 %v501
        %v549 = vunpack.c.l.b16 %v502
        %v550 = vunpack.c.l.b16 %v503
        %v551 = vunpack.c.l.b16 %v504
        %v552 = vunpack.c.l.b16 %v505
        %v553 = vunpack.c.l.b16 %v506
        %v554 = vunpack.c.l.b16 %v507
        %v555 = vunpack.c.l.b16 %v508
        %v556 = vunpack.c.l.b16 %v509
        %v557 = vunpack.c.l.b16 %v510
        %v558 = vunpack.c.l.b16 %v511
        %v559 = vunpack.c.l.b16 %v512
        %v560 = vunpack.c.l.b16 %v513
        %v561 = vunpack.c.l.b16 %v514
        %v562 = vpack.c.b16 %v547, %v546
        %v563 = vpack.c.b16 %v549, %v548
        %v564 = vpack.c.b16 %v551, %v550
        %v565 = vpack.c.b16 %v553, %v552
        %v566 = vpack.c.b16 %v555, %v554
        %v567 = vpack.c.b16 %v557, %v556
        %v568 = vpack.c.b16 %v559, %v558
        %v569 = vpack.c.b16 %v561, %v560
        %578 = vmatprep.subr.bf16.mxu0 0
        %579 = vmatpush1.bf16.msra.mxu0 %v562
        %580 = vmatprep.subr.bf16.mxu0 0
        %581 = vmatpush1.bf16.msra.mxu0 %v563
        %582 = vmatprep.subr.bf16.mxu0 0
        %583 = vmatpush1.bf16.msra.mxu0 %v564
        %584 = vmatprep.subr.bf16.mxu0 0
        %585 = vmatpush1.bf16.msra.mxu0 %v565
        %586 = vmatprep.subr.bf16.mxu0 0
        %587 = vmatpush1.bf16.msra.mxu0 %v566
        %588 = vmatprep.subr.bf16.mxu0 0
        %589 = vmatpush1.bf16.msra.mxu0 %v567
        %590 = vmatprep.subr.bf16.mxu0 0
        %591 = vmatpush1.bf16.msra.mxu0 %v568
        %592 = vmatprep.subr.bf16.mxu0 0
        %593 = vmatpush1.bf16.msra.mxu0 %v569
        %594 = vmatprep.subr.bf16.mxu0 0
        %595 = vmatpush1.bf16.msra.mxu0 0
        %596 = vmatprep.subr.bf16.mxu0 0
        %597 = vmatpush1.bf16.msra.mxu0 0
        %598 = vmatprep.subr.bf16.mxu0 0
        %599 = vmatpush1.bf16.msra.mxu0 0
        %600 = vmatprep.subr.bf16.mxu0 0
        %601 = vmatpush1.bf16.msra.mxu0 0
        %602 = vmatprep.subr.bf16.mxu0 0
        %603 = vmatpush1.bf16.msra.mxu0 0
        %604 = vmatprep.subr.bf16.mxu0 0
        %605 = vmatpush1.bf16.msra.mxu0 0
        %606 = vmatprep.subr.bf16.mxu0 0
        %607 = vmatpush1.bf16.msra.mxu0 0
        %608 = vmatprep.subr.bf16.mxu0 0
        %609 = vmatpush1.bf16.msra.mxu0 0
        %610 = vmatprep.mubr.bf16.mxu0 0
        %611 = vmatmul.mubr.bf16.gmra.mrb[0].mxu0 %v516
        %v612 = vpop.f32.mrb[0].mxu0
        %v613 = vadd.f32 %v528, %v612
        %v614 = vpop.f32.mrb[0].mxu0
        %v615 = vpop.f32.mrb[0].mxu0
        %v616 = vadd.f32 %v528, %v615
        %v617 = vpop.f32.mrb[0].mxu0
        %618 = vmatprep.mubr.bf16.mxu0 0
        %619 = vmatmul.mubr.bf16.gmra.mrb[0].mxu0 %v517
        %v620 = vpop.f32.mrb[0].mxu0
        %v621 = vadd.f32 %v528, %v620
        %v622 = vpop.f32.mrb[0].mxu0
        %v623 = vpop.f32.mrb[0].mxu0
        %v624 = vadd.f32 %v528, %v623
        %v625 = vpop.f32.mrb[0].mxu0
        %626 = vmatprep.mubr.bf16.mxu0 0
        %627 = vmatmul.mubr.bf16.gmra.mrb[0].mxu0 %v518
        %v628 = vpop.f32.mrb[0].mxu0
        %v629 = vadd.f32 %v528, %v628
        %v630 = vpop.f32.mrb[0].mxu0
        %v631 = vpop.f32.mrb[0].mxu0
        %v632 = vadd.f32 %v528, %v631
        %v633 = vpop.f32.mrb[0].mxu0
        %634 = vmatprep.mubr.bf16.mxu0 0
        %635 = vmatmul.mubr.bf16.gmra.mrb[0].mxu0 %v519
        %v636 = vpop.f32.mrb[0].mxu0
        %v637 = vadd.f32 %v528, %v636
        %v638 = vpop.f32.mrb[0].mxu0
        %v639 = vpop.f32.mrb[0].mxu0
        %v640 = vadd.f32 %v528, %v639
        %v641 = vpop.f32.mrb[0].mxu0
        %642 = vmatprep.mubr.bf16.mxu0 0
        %643 = vmatmul.mubr.bf16.gmra.mrb[0].mxu0 %v520
        %v644 = vpop.f32.mrb[0].mxu0
        %v645 = vadd.f32 %v528, %v644
        %v646 = vpop.f32.mrb[0].mxu0
        %v647 = vpop.f32.mrb[0].mxu0
        %v648 = vadd.f32 %v528, %v647
        %v649 = vpop.f32.mrb[0].mxu0
        %650 = vmatprep.mubr.bf16.mxu0 0
        %651 = vmatmul.mubr.bf16.gmra.mrb[0].mxu0 %v521
        %v652 = vpop.f32.mrb[0].mxu0
        %v653 = vadd.f32 %v528, %v652
        %v654 = vpop.f32.mrb[0].mxu0
        %v655 = vpop.f32.mrb[0].mxu0
        %v656 = vadd.f32 %v528, %v655
        %v657 = vpop.f32.mrb[0].mxu0
        %658 = vmatprep.mubr.bf16.mxu0 0
        %659 = vmatmul.mubr.bf16.gmra.mrb[0].mxu0 %v522
        %v660 = vpop.f32.mrb[0].mxu0
        %v661 = vadd.f32 %v528, %v660
        %v662 = vpop.f32.mrb[0].mxu0
        %v663 = vpop.f32.mrb[0].mxu0
        %v664 = vadd.f32 %v528, %v663
        %v665 = vpop.f32.mrb[0].mxu0
        %666 = vmatprep.mubr.bf16.mxu0 0
        %667 = vmatmul.mubr.bf16.gmra.mrb[0].mxu0 %v523
        %v668 = vpop.f32.mrb[0].mxu0
        %v669 = vadd.f32 %v528, %v668
        %v670 = vpop.f32.mrb[0].mxu0
        %v671 = vpop.f32.mrb[0].mxu0
        %v672 = vadd.f32 %v528, %v671
        %v673 = vpop.f32.mrb[0].mxu0
        %674 = vdwg.mxu0
        %v675 = vmax.f32 %v613, 0.0
        %v676 = vmax.f32 %v616, 0.0
        %v677 = vmax.f32 %v621, 0.0
        %v678 = vmax.f32 %v624, 0.0
        %v679 = vmax.f32 %v629, 0.0
        %v680 = vmax.f32 %v632, 0.0
        %v681 = vmax.f32 %v637, 0.0
        %v682 = vmax.f32 %v640, 0.0
        %v683 = vmax.f32 %v645, 0.0
        %v684 = vmax.f32 %v648, 0.0
        %v685 = vmax.f32 %v653, 0.0
        %v686 = vmax.f32 %v656, 0.0
        %v687 = vmax.f32 %v661, 0.0
        %v688 = vmax.f32 %v664, 0.0
        %v689 = vmax.f32 %v669, 0.0
        %v690 = vmax.f32 %v672, 0.0
        %v691 = vld [vmem:[%s418 + $0x7] sm:$0x1]
        %v692 = vpack.c.bf16 %v691, %v691
        %v693 = vld [vmem:[%s427] sm:$0x1]
        %v694 = vpack.c.bf16 %v693, %v693
        %695 = vmatprep.subr.bf16.mxu0 0
        %696 = vmatpush1.bf16.msra.mxu0 %v562
        %697 = vmatprep.subr.bf16.mxu0 0
        %698 = vmatpush1.bf16.msra.mxu0 %v563
        %699 = vmatprep.subr.bf16.mxu0 0
        %700 = vmatpush1.bf16.msra.mxu0 %v564
        %701 = vmatprep.subr.bf16.mxu0 0
        %702 = vmatpush1.bf16.msra.mxu0 %v565
        %703 = vmatprep.subr.bf16.mxu0 0
        %704 = vmatpush1.bf16.msra.mxu0 %v566
        %705 = vmatprep.subr.bf16.mxu0 0
        %706 = vmatpush1.bf16.msra.mxu0 %v567
        %707 = vmatprep.subr.bf16.mxu0 0
        %708 = vmatpush1.bf16.msra.mxu0 %v568
        %709 = vmatprep.subr.bf16.mxu0 0
        %710 = vmatpush1.bf16.msra.mxu0 %v569
        %711 = vmatprep.subr.bf16.mxu0 0
        %712 = vmatpush1.bf16.msra.mxu0 0
        %713 = vmatprep.subr.bf16.mxu0 0
        %714 = vmatpush1.bf16.msra.mxu0 0
        %715 = vmatprep.subr.bf16.mxu0 0
        %716 = vmatpush1.bf16.msra.mxu0 0
        %717 = vmatprep.subr.bf16.mxu0 0
        %718 = vmatpush1.bf16.msra.mxu0 0
        %719 = vmatprep.subr.bf16.mxu0 0
        %720 = vmatpush1.bf16.msra.mxu0 0
        %721 = vmatprep.subr.bf16.mxu0 0
        %722 = vmatpush1.bf16.msra.mxu0 0
        %723 = vmatprep.subr.bf16.mxu0 0
        %724 = vmatpush1.bf16.msra.mxu0 0
        %725 = vmatprep.subr.bf16.mxu0 0
        %726 = vmatpush1.bf16.msra.mxu0 0
        %727 = vmatprep.mubr.bf16.mxu0 0
        %728 = vmatmul.mubr.bf16.gmra.mrb[0].mxu0 %v692
        %v729 = vpop.f32.mrb[0].mxu0
        %v730 = vadd.f32 %v515, %v729
        %v731 = vpop.f32.mrb[0].mxu0
        %v732 = vpop.f32.mrb[0].mxu0
        %v733 = vpop.f32.mrb[0].mxu0
        %734 = vdwg.mxu0
        %v735 = vmax.f32 %v730, 0.0
        %736 = vmatprep.subr.bf16.mxu0 0
        %737 = vmatpush1.bf16.msra.mxu0 %v562
        %738 = vmatprep.subr.bf16.mxu0 0
        %739 = vmatpush1.bf16.msra.mxu0 %v563
        %740 = vmatprep.subr.bf16.mxu0 0
        %741 = vmatpush1.bf16.msra.mxu0 %v564
        %742 = vmatprep.subr.bf16.mxu0 0
        %743 = vmatpush1.bf16.msra.mxu0 %v565
        %744 = vmatprep.subr.bf16.mxu0 0
        %745 = vmatpush1.bf16.msra.mxu0 %v566
        %746 = vmatprep.subr.bf16.mxu0 0
        %747 = vmatpush1.bf16.msra.mxu0 %v567
        %748 = vmatprep.subr.bf16.mxu0 0
        %749 = vmatpush1.bf16.msra.mxu0 %v568
        %750 = vmatprep.subr.bf16.mxu0 0
        %751 = vmatpush1.bf16.msra.mxu0 %v569
        %752 = vmatprep.subr.bf16.mxu0 0
        %753 = vmatpush1.bf16.msra.mxu0 0
        %754 = vmatprep.subr.bf16.mxu0 0
        %755 = vmatpush1.bf16.msra.mxu0 0
        %756 = vmatprep.subr.bf16.mxu0 0
        %757 = vmatpush1.bf16.msra.mxu0 0
        %758 = vmatprep.subr.bf16.mxu0 0
        %759 = vmatpush1.bf16.msra.mxu0 0
        %760 = vmatprep.subr.bf16.mxu0 0
        %761 = vmatpush1.bf16.msra.mxu0 0
        %762 = vmatprep.subr.bf16.mxu0 0
        %763 = vmatpush1.bf16.msra.mxu0 0
        %764 = vmatprep.subr.bf16.mxu0 0
        %765 = vmatpush1.bf16.msra.mxu0 0
        %766 = vmatprep.subr.bf16.mxu0 0
        %767 = vmatpush1.bf16.msra.mxu0 0
        %768 = vmatprep.mubr.bf16.mxu0 0
        %769 = vmatmul.mubr.bf16.gmra.mrb[0].mxu0 %v694
        %v770 = vpop.f32.mrb[0].mxu0
        %v771 = vadd.f32 %v515, %v770
        %v772 = vpop.f32.mrb[0].mxu0
        %v773 = vpop.f32.mrb[0].mxu0
        %v774 = vpop.f32.mrb[0].mxu0
        %775 = vdwg.mxu0
        %v776 = vmax.f32 %v771, 0.0
        %p777 = scmp.gt.s32.totalorder %s34, 0
        %s778 = scalar_select %p777, 1, 0
        %s779 = scvt.s32.f32 %s778
        %v780 = vstv %s779
        %v781 = vmul.f32 %v735, %v780
        %p782 = scmp.lt.s32.totalorder %s34, 3
        %s783 = scalar_select %p782, 1, 0
        %s784 = scvt.s32.f32 %s783
        %v785 = vstv %s784
        %v786 = vmul.f32 %v776, %v785
        %vm803 = vcmask 1040384
        %v804 = vrot.slane %v675, 7
        %v805 = vrot.slane %v676, 7
        %v806 = vsel %vm803, %v804, %v805
        %v807 = vrot.slane %v677, 7
        %v808 = vsel %vm803, %v805, %v807
        %v809 = vrot.slane %v678, 7
        %v810 = vsel %vm803, %v807, %v809
        %v811 = vrot.slane %v679, 7
        %v812 = vsel %vm803, %v809, %v811
        %v813 = vrot.slane %v680, 7
        %v814 = vsel %vm803, %v811, %v813
        %v815 = vrot.slane %v681, 7
        %v816 = vsel %vm803, %v813, %v815
        %v817 = vrot.slane %v682, 7
        %v818 = vsel %vm803, %v815, %v817
        %v819 = vrot.slane %v683, 7
        %v820 = vsel %vm803, %v817, %v819
        %v821 = vrot.slane %v684, 7
        %v822 = vsel %vm803, %v819, %v821
        %v823 = vrot.slane %v685, 7
        %v824 = vsel %vm803, %v821, %v823
        %v825 = vrot.slane %v686, 7
        %v826 = vsel %vm803, %v823, %v825
        %v827 = vrot.slane %v687, 7
        %v828 = vsel %vm803, %v825, %v827
        %v829 = vrot.slane %v688, 7
        %v830 = vsel %vm803, %v827, %v829
        %v831 = vrot.slane %v689, 7
        %v832 = vsel %vm803, %v829, %v831
        %v833 = vrot.slane %v690, 7
        %v834 = vsel %vm803, %v831, %v833
        %v853 = vrot.slane %v786, 7
        %v855 = vsel %vm803, %v781, %v804
        %v856 = vsel %vm803, %v833, %v853
        %vm859 = vcmask 1046528
        %v860 = vrot.slane %v855, 1
        %v861 = vrot.slane %v806, 1
        %v862 = vsel %vm859, %v860, %v861
        %v863 = vrot.slane %v808, 1
        %v864 = vsel %vm859, %v861, %v863
        %v865 = vrot.slane %v810, 1
        %v866 = vsel %vm859, %v863, %v865
        %v867 = vrot.slane %v812, 1
        %v868 = vsel %vm859, %v865, %v867
        %v869 = vrot.slane %v814, 1
        %v870 = vsel %vm859, %v867, %v869
        %v871 = vrot.slane %v816, 1
        %v872 = vsel %vm859, %v869, %v871
        %v873 = vrot.slane %v818, 1
        %v874 = vsel %vm859, %v871, %v873
        %v875 = vrot.slane %v820, 1
        %v876 = vsel %vm859, %v873, %v875
        %v877 = vrot.slane %v822, 1
        %v878 = vsel %vm859, %v875, %v877
        %v879 = vrot.slane %v824, 1
        %v880 = vsel %vm859, %v877, %v879
        %v881 = vrot.slane %v826, 1
        %v882 = vsel %vm859, %v879, %v881
        %v883 = vrot.slane %v828, 1
        %v884 = vsel %vm859, %v881, %v883
        %v885 = vrot.slane %v830, 1
        %v886 = vsel %vm859, %v883, %v885
        %v887 = vrot.slane %v832, 1
        %v888 = vsel %vm859, %v885, %v887
        %v889 = vrot.slane %v834, 1
        %v890 = vsel %vm859, %v887, %v889
        %v891 = vrot.slane %v856, 1
        %v892 = vsel %vm859, %v889, %v891
        %893 = vrot.lane.b32.xlu0 %v862, 32
        %v894 = vpop.permute.xlu0 %893
        %895 = vrot.lane.b32.xlu0 %v864, 32
        %v896 = vpop.permute.xlu0 %895
        %897 = vrot.lane.b32.xlu0 %v866, 32
        %v898 = vpop.permute.xlu0 %897
        %899 = vrot.lane.b32.xlu0 %v868, 32
        %v900 = vpop.permute.xlu0 %899
        %901 = vrot.lane.b32.xlu0 %v870, 32
        %v902 = vpop.permute.xlu0 %901
        %903 = vrot.lane.b32.xlu0 %v872, 32
        %v904 = vpop.permute.xlu0 %903
        %905 = vrot.lane.b32.xlu0 %v874, 32
        %v906 = vpop.permute.xlu0 %905
        %907 = vrot.lane.b32.xlu0 %v876, 32
        %v908 = vpop.permute.xlu0 %907
        %909 = vrot.lane.b32.xlu0 %v878, 32
        %v910 = vpop.permute.xlu0 %909
        %911 = vrot.lane.b32.xlu0 %v880, 32
        %v912 = vpop.permute.xlu0 %911
        %913 = vrot.lane.b32.xlu0 %v882, 32
        %v914 = vpop.permute.xlu0 %913
        %915 = vrot.lane.b32.xlu0 %v884, 32
        %v916 = vpop.permute.xlu0 %915
        %917 = vrot.lane.b32.xlu0 %v886, 32
        %v918 = vpop.permute.xlu0 %917
        %919 = vrot.lane.b32.xlu0 %v888, 32
        %v920 = vpop.permute.xlu0 %919
        %921 = vrot.lane.b32.xlu0 %v890, 32
        %v922 = vpop.permute.xlu0 %921
        %923 = vrot.lane.b32.xlu0 %v892, 32
        %v924 = vpop.permute.xlu0 %923
        %vm941 = vcmask 1045504
        %v942 = vrot.slane %v855, 2
        %v943 = vrot.slane %v806, 2
        %v944 = vsel %vm941, %v942, %v943
        %v945 = vrot.slane %v808, 2
        %v946 = vsel %vm941, %v943, %v945
        %v947 = vrot.slane %v810, 2
        %v948 = vsel %vm941, %v945, %v947
        %v949 = vrot.slane %v812, 2
        %v950 = vsel %vm941, %v947, %v949
        %v951 = vrot.slane %v814, 2
        %v952 = vsel %vm941, %v949, %v951
        %v953 = vrot.slane %v816, 2
        %v954 = vsel %vm941, %v951, %v953
        %v955 = vrot.slane %v818, 2
        %v956 = vsel %vm941, %v953, %v955
        %v957 = vrot.slane %v820, 2
        %v958 = vsel %vm941, %v955, %v957
        %v959 = vrot.slane %v822, 2
        %v960 = vsel %vm941, %v957, %v959
        %v961 = vrot.slane %v824, 2
        %v962 = vsel %vm941, %v959, %v961
        %v963 = vrot.slane %v826, 2
        %v964 = vsel %vm941, %v961, %v963
        %v965 = vrot.slane %v828, 2
        %v966 = vsel %vm941, %v963, %v965
        %v967 = vrot.slane %v830, 2
        %v968 = vsel %vm941, %v965, %v967
        %v969 = vrot.slane %v832, 2
        %v970 = vsel %vm941, %v967, %v969
        %v971 = vrot.slane %v834, 2
        %v972 = vsel %vm941, %v969, %v971
        %v973 = vrot.slane %v856, 2
        %v974 = vsel %vm941, %v971, %v973
        %975 = vrot.lane.b32.xlu0 %v944, 64
        %v976 = vpop.permute.xlu0 %975
        %977 = vrot.lane.b32.xlu0 %v946, 64
        %v978 = vpop.permute.xlu0 %977
        %979 = vrot.lane.b32.xlu0 %v948, 64
        %v980 = vpop.permute.xlu0 %979
        %981 = vrot.lane.b32.xlu0 %v950, 64
        %v982 = vpop.permute.xlu0 %981
        %983 = vrot.lane.b32.xlu0 %v952, 64
        %v984 = vpop.permute.xlu0 %983
        %985 = vrot.lane.b32.xlu0 %v954, 64
        %v986 = vpop.permute.xlu0 %985
        %987 = vrot.lane.b32.xlu0 %v956, 64
        %v988 = vpop.permute.xlu0 %987
        %989 = vrot.lane.b32.xlu0 %v958, 64
        %v990 = vpop.permute.xlu0 %989
        %991 = vrot.lane.b32.xlu0 %v960, 64
        %v992 = vpop.permute.xlu0 %991
        %993 = vrot.lane.b32.xlu0 %v962, 64
        %v994 = vpop.permute.xlu0 %993
        %995 = vrot.lane.b32.xlu0 %v964, 64
        %v996 = vpop.permute.xlu0 %995
        %997 = vrot.lane.b32.xlu0 %v966, 64
        %v998 = vpop.permute.xlu0 %997
        %999 = vrot.lane.b32.xlu0 %v968, 64
        %v1000 = vpop.permute.xlu0 %999
        %1001 = vrot.lane.b32.xlu0 %v970, 64
        %v1002 = vpop.permute.xlu0 %1001
        %1003 = vrot.lane.b32.xlu0 %v972, 64
        %v1004 = vpop.permute.xlu0 %1003
        %1005 = vrot.lane.b32.xlu0 %v974, 64
        %v1006 = vpop.permute.xlu0 %1005
        %vm1023 = vcmask 261120
        %v1024 = vsel %vm1023, %v855, %v894
        %v1025 = vsel %vm1023, %v806, %v896
        %v1026 = vsel %vm1023, %v808, %v898
        %v1027 = vsel %vm1023, %v810, %v900
        %v1028 = vsel %vm1023, %v812, %v902
        %v1029 = vsel %vm1023, %v814, %v904
        %v1030 = vsel %vm1023, %v816, %v906
        %v1031 = vsel %vm1023, %v818, %v908
        %v1032 = vsel %vm1023, %v820, %v910
        %v1033 = vsel %vm1023, %v822, %v912
        %v1034 = vsel %vm1023, %v824, %v914
        %v1035 = vsel %vm1023, %v826, %v916
        %v1036 = vsel %vm1023, %v828, %v918
        %v1037 = vsel %vm1023, %v830, %v920
        %v1038 = vsel %vm1023, %v832, %v922
        %v1039 = vsel %vm1023, %v834, %v924
        %vm1040 = vcmask 523264
        %v1041 = vsel %vm1040, %v1024, %v976
        %v1042 = vsel %vm1040, %v1025, %v978
        %v1043 = vsel %vm1040, %v1026, %v980
        %v1044 = vsel %vm1040, %v1027, %v982
        %v1045 = vsel %vm1040, %v1028, %v984
        %v1046 = vsel %vm1040, %v1029, %v986
        %v1047 = vsel %vm1040, %v1030, %v988
        %v1048 = vsel %vm1040, %v1031, %v990
        %v1049 = vsel %vm1040, %v1032, %v992
        %v1050 = vsel %vm1040, %v1033, %v994
        %v1051 = vsel %vm1040, %v1034, %v996
        %v1052 = vsel %vm1040, %v1035, %v998
        %v1053 = vsel %vm1040, %v1036, %v1000
        %v1054 = vsel %vm1040, %v1037, %v1002
        %v1055 = vsel %vm1040, %v1038, %v1004
        %v1056 = vsel %vm1040, %v1039, %v1006
        %v1057 = vpack.c.bf16 %v1042, %v1041
        %v1058 = vpack.c.bf16 %v1044, %v1043
        %v1059 = vpack.c.bf16 %v1046, %v1045
        %v1060 = vpack.c.bf16 %v1048, %v1047
        %v1061 = vpack.c.bf16 %v1050, %v1049
        %v1062 = vpack.c.bf16 %v1052, %v1051
        %v1063 = vpack.c.bf16 %v1054, %v1053
        %v1064 = vpack.c.bf16 %v1056, %v1055
        %v1065 = vld [vmem:[%s5] sm:$0xf]
        %v1066 = vld [vmem:[%s5 + $0x4] sm:$0xf]
        %v1067 = vld [vmem:[%s5 + $0x8] sm:$0xf]
        %v1068 = vld [vmem:[%s5 + $0xc] sm:$0xf]
        %v1069 = vld [vmem:[%s5 + $0x10] sm:$0xf]
        %v1070 = vld [vmem:[%s5 + $0x14] sm:$0xf]
        %v1071 = vld [vmem:[%s5 + $0x18] sm:$0xf]
        %v1072 = vld [vmem:[%s5 + $0x1c] sm:$0xf]
        %v1073 = vld [vmem:[%s5 + $0x20] sm:$0xf]
        %v1074 = vld [vmem:[%s5 + $0x24] sm:$0xf]
        %v1075 = vld [vmem:[%s5 + $0x28] sm:$0xf]
        %v1076 = vld [vmem:[%s5 + $0x2c] sm:$0xf]
        %v1077 = vld [vmem:[%s6] sm:$0x1]
        %v1079 = vlaneseq
        %v1080 = vshrl.u32 %v1079, 7
        %v1081 = vsub.s32 0, %v1080
        %v1082 = vrot.slane %v1077, %v1081
        %v1096 = vunpack.c.l.b16 %v1065
        %v1097 = vunpack.c.l.b16 %v1066
        %v1098 = vunpack.c.l.b16 %v1067
        %v1099 = vunpack.c.l.b16 %v1068
        %v1100 = vunpack.c.l.b16 %v1069
        %v1101 = vunpack.c.l.b16 %v1070
        %v1102 = vunpack.c.l.b16 %v1071
        %v1103 = vunpack.c.l.b16 %v1072
        %v1104 = vunpack.c.l.b16 %v1073
        %v1105 = vunpack.c.l.b16 %v1074
        %v1106 = vunpack.c.l.b16 %v1075
        %v1107 = vunpack.c.l.b16 %v1076
        %v1108 = vpack.c.b16 %v1097, %v1096
        %v1109 = vpack.c.b16 %v1099, %v1098
        %v1110 = vpack.c.b16 %v1101, %v1100
        %v1111 = vpack.c.b16 %v1103, %v1102
        %v1112 = vpack.c.b16 %v1105, %v1104
        %v1113 = vpack.c.b16 %v1107, %v1106
        %vm1120 = vcmask 785408
        %v1122 = vsel %vm1120, %v1057, 0
        %v1125 = vsel %vm1120, %v1058, 0
        %v1128 = vsel %vm1120, %v1059, 0
        %v1131 = vsel %vm1120, %v1060, 0
        %v1134 = vsel %vm1120, %v1061, 0
        %v1137 = vsel %vm1120, %v1062, 0
        %v1140 = vsel %vm1120, %v1063, 0
        %v1143 = vsel %vm1120, %v1064, 0
        %1145 = vmatprep.subr.bf16.mxu0 0
        %1146 = vmatpush1.bf16.msra.mxu0 %v1108
        %1147 = vmatprep.subr.bf16.mxu0 0
        %1148 = vmatpush1.bf16.msra.mxu0 %v1109
        %1149 = vmatprep.subr.bf16.mxu0 0
        %1150 = vmatpush1.bf16.msra.mxu0 %v1110
        %1151 = vmatprep.subr.bf16.mxu0 0
        %1152 = vmatpush1.bf16.msra.mxu0 %v1111
        %1153 = vmatprep.subr.bf16.mxu0 0
        %1154 = vmatpush1.bf16.msra.mxu0 %v1112
        %1155 = vmatprep.subr.bf16.mxu0 0
        %1156 = vmatpush1.bf16.msra.mxu0 %v1113
        %1157 = vmatprep.subr.bf16.mxu0 0
        %1158 = vmatpush1.bf16.msra.mxu0 0
        %1159 = vmatprep.subr.bf16.mxu0 0
        %1160 = vmatpush1.bf16.msra.mxu0 0
        %1161 = vmatprep.subr.bf16.mxu0 0
        %1162 = vmatpush1.bf16.msra.mxu0 0
        %1163 = vmatprep.subr.bf16.mxu0 0
        %1164 = vmatpush1.bf16.msra.mxu0 0
        %1165 = vmatprep.subr.bf16.mxu0 0
        %1166 = vmatpush1.bf16.msra.mxu0 0
        %1167 = vmatprep.subr.bf16.mxu0 0
        %1168 = vmatpush1.bf16.msra.mxu0 0
        %1169 = vmatprep.subr.bf16.mxu0 0
        %1170 = vmatpush1.bf16.msra.mxu0 0
        %1171 = vmatprep.subr.bf16.mxu0 0
        %1172 = vmatpush1.bf16.msra.mxu0 0
        %1173 = vmatprep.subr.bf16.mxu0 0
        %1174 = vmatpush1.bf16.msra.mxu0 0
        %1175 = vmatprep.subr.bf16.mxu0 0
        %1176 = vmatpush1.bf16.msra.mxu0 0
        %1177 = vmatprep.mubr.bf16.mxu0 0
        %1178 = vmatmul.mubr.bf16.gmra.mrb[0].mxu0 %v1122
        %v1179 = vpop.f32.mrb[0].mxu0
        %v1180 = vadd.f32 %v1082, %v1179
        %v1181 = vpop.f32.mrb[0].mxu0
        %v1182 = vpop.f32.mrb[0].mxu0
        %v1183 = vadd.f32 %v1082, %v1182
        %v1184 = vpop.f32.mrb[0].mxu0
        %1185 = vmatprep.mubr.bf16.mxu0 0
        %1186 = vmatmul.mubr.bf16.gmra.mrb[0].mxu0 %v1125
        %v1187 = vpop.f32.mrb[0].mxu0
        %v1188 = vadd.f32 %v1082, %v1187
        %v1189 = vpop.f32.mrb[0].mxu0
        %v1190 = vpop.f32.mrb[0].mxu0
        %v1191 = vadd.f32 %v1082, %v1190
        %v1192 = vpop.f32.mrb[0].mxu0
        %1193 = vmatprep.mubr.bf16.mxu0 0
        %1194 = vmatmul.mubr.bf16.gmra.mrb[0].mxu0 %v1128
        %v1195 = vpop.f32.mrb[0].mxu0
        %v1196 = vadd.f32 %v1082, %v1195
        %v1197 = vpop.f32.mrb[0].mxu0
        %v1198 = vpop.f32.mrb[0].mxu0
        %v1199 = vadd.f32 %v1082, %v1198
        %v1200 = vpop.f32.mrb[0].mxu0
        %1201 = vmatprep.mubr.bf16.mxu0 0
        %1202 = vmatmul.mubr.bf16.gmra.mrb[0].mxu0 %v1131
        %v1203 = vpop.f32.mrb[0].mxu0
        %v1204 = vadd.f32 %v1082, %v1203
        %v1205 = vpop.f32.mrb[0].mxu0
        %v1206 = vpop.f32.mrb[0].mxu0
        %v1207 = vadd.f32 %v1082, %v1206
        %v1208 = vpop.f32.mrb[0].mxu0
        %1209 = vmatprep.mubr.bf16.mxu0 0
        %1210 = vmatmul.mubr.bf16.gmra.mrb[0].mxu0 %v1134
        %v1211 = vpop.f32.mrb[0].mxu0
        %v1212 = vadd.f32 %v1082, %v1211
        %v1213 = vpop.f32.mrb[0].mxu0
        %v1214 = vpop.f32.mrb[0].mxu0
        %v1215 = vadd.f32 %v1082, %v1214
        %v1216 = vpop.f32.mrb[0].mxu0
        %1217 = vmatprep.mubr.bf16.mxu0 0
        %1218 = vmatmul.mubr.bf16.gmra.mrb[0].mxu0 %v1137
        %v1219 = vpop.f32.mrb[0].mxu0
        %v1220 = vadd.f32 %v1082, %v1219
        %v1221 = vpop.f32.mrb[0].mxu0
        %v1222 = vpop.f32.mrb[0].mxu0
        %v1223 = vadd.f32 %v1082, %v1222
        %v1224 = vpop.f32.mrb[0].mxu0
        %1225 = vmatprep.mubr.bf16.mxu0 0
        %1226 = vmatmul.mubr.bf16.gmra.mrb[0].mxu0 %v1140
        %v1227 = vpop.f32.mrb[0].mxu0
        %v1228 = vadd.f32 %v1082, %v1227
        %v1229 = vpop.f32.mrb[0].mxu0
        %v1230 = vpop.f32.mrb[0].mxu0
        %v1231 = vadd.f32 %v1082, %v1230
        %v1232 = vpop.f32.mrb[0].mxu0
        %1233 = vmatprep.mubr.bf16.mxu0 0
        %1234 = vmatmul.mubr.bf16.gmra.mrb[0].mxu0 %v1143
        %v1235 = vpop.f32.mrb[0].mxu0
        %v1236 = vadd.f32 %v1082, %v1235
        %v1237 = vpop.f32.mrb[0].mxu0
        %v1238 = vpop.f32.mrb[0].mxu0
        %v1239 = vadd.f32 %v1082, %v1238
        %v1240 = vpop.f32.mrb[0].mxu0
        %1241 = vdwg.mxu0
        %v1242 = vmax.f32 %v1180, 0.0
        %v1243 = vmax.f32 %v1183, 0.0
        %v1244 = vmax.f32 %v1188, 0.0
        %v1245 = vmax.f32 %v1191, 0.0
        %v1246 = vmax.f32 %v1196, 0.0
        %v1247 = vmax.f32 %v1199, 0.0
        %v1248 = vmax.f32 %v1204, 0.0
        %v1249 = vmax.f32 %v1207, 0.0
        %v1250 = vmax.f32 %v1212, 0.0
        %v1251 = vmax.f32 %v1215, 0.0
        %v1252 = vmax.f32 %v1220, 0.0
        %v1253 = vmax.f32 %v1223, 0.0
        %v1254 = vmax.f32 %v1228, 0.0
        %v1255 = vmax.f32 %v1231, 0.0
        %v1256 = vmax.f32 %v1236, 0.0
        %v1257 = vmax.f32 %v1239, 0.0
        %v1258 = vpack.c.bf16 %v1243, %v1242
        %v1259 = vpack.c.bf16 %v1245, %v1244
        %v1260 = vpack.c.bf16 %v1247, %v1246
        %v1261 = vpack.c.bf16 %v1249, %v1248
        %v1262 = vpack.c.bf16 %v1251, %v1250
        %v1263 = vpack.c.bf16 %v1253, %v1252
        %v1264 = vpack.c.bf16 %v1255, %v1254
        %v1265 = vpack.c.bf16 %v1257, %v1256
        %v1266 = vld [vmem:[%s7] sm:$0xf]
        %v1267 = vld [vmem:[%s7 + $0x4] sm:$0xf]
        %v1268 = vld [vmem:[%s7 + $0x8] sm:$0xf]
        %v1269 = vld [vmem:[%s7 + $0xc] sm:$0xf]
        %v1270 = vld [vmem:[%s8] sm:$0x1]
        %v1272 = vlaneseq
        %v1273 = vshrl.u32 %v1272, 7
        %v1274 = vsub.s32 0, %v1273
        %v1275 = vrot.slane %v1270, %v1274
        %v1281 = vunpack.c.l.b16 %v1266
        %v1282 = vunpack.c.l.b16 %v1267
        %v1283 = vunpack.c.l.b16 %v1268
        %v1284 = vunpack.c.l.b16 %v1269
        %v1285 = vpack.c.b16 %v1282, %v1281
        %v1286 = vpack.c.b16 %v1284, %v1283
        %v1290 = vsel %vm1023, %v1258, 0
        %v1293 = vsel %vm1023, %v1259, 0
        %v1296 = vsel %vm1023, %v1260, 0
        %v1299 = vsel %vm1023, %v1261, 0
        %v1302 = vsel %vm1023, %v1262, 0
        %v1305 = vsel %vm1023, %v1263, 0
        %v1308 = vsel %vm1023, %v1264, 0
        %v1311 = vsel %vm1023, %v1265, 0
        %1313 = vmatprep.subr.bf16.mxu0 0
        %1314 = vmatpush1.bf16.msra.mxu0 %v1285
        %1315 = vmatprep.subr.bf16.mxu0 0
        %1316 = vmatpush1.bf16.msra.mxu0 %v1286
        %1317 = vmatprep.subr.bf16.mxu0 0
        %1318 = vmatpush1.bf16.msra.mxu0 0
        %1319 = vmatprep.subr.bf16.mxu0 0
        %1320 = vmatpush1.bf16.msra.mxu0 0
        %1321 = vmatprep.subr.bf16.mxu0 0
        %1322 = vmatpush1.bf16.msra.mxu0 0
        %1323 = vmatprep.subr.bf16.mxu0 0
        %1324 = vmatpush1.bf16.msra.mxu0 0
        %1325 = vmatprep.subr.bf16.mxu0 0
        %1326 = vmatpush1.bf16.msra.mxu0 0
        %1327 = vmatprep.subr.bf16.mxu0 0
        %1328 = vmatpush1.bf16.msra.mxu0 0
        %1329 = vmatprep.subr.bf16.mxu0 0
        %1330 = vmatpush1.bf16.msra.mxu0 0
        %1331 = vmatprep.subr.bf16.mxu0 0
        %1332 = vmatpush1.bf16.msra.mxu0 0
        %1333 = vmatprep.subr.bf16.mxu0 0
        %1334 = vmatpush1.bf16.msra.mxu0 0
        %1335 = vmatprep.subr.bf16.mxu0 0
        %1336 = vmatpush1.bf16.msra.mxu0 0
        %1337 = vmatprep.subr.bf16.mxu0 0
        %1338 = vmatpush1.bf16.msra.mxu0 0
        %1339 = vmatprep.subr.bf16.mxu0 0
        %1340 = vmatpush1.bf16.msra.mxu0 0
        %1341 = vmatprep.subr.bf16.mxu0 0
        %1342 = vmatpush1.bf16.msra.mxu0 0
        %1343 = vmatprep.subr.bf16.mxu0 0
        %1344 = vmatpush1.bf16.msra.mxu0 0
        %1345 = vmatprep.mubr.bf16.mxu0 0
        %1346 = vmatmul.mubr.bf16.gmra.mrb[0].mxu0 %v1290
        %v1347 = vpop.f32.mrb[0].mxu0
        %v1348 = vadd.f32 %v1275, %v1347
        %v1349 = vpop.f32.mrb[0].mxu0
        %v1350 = vpop.f32.mrb[0].mxu0
        %v1351 = vadd.f32 %v1275, %v1350
        %v1352 = vpop.f32.mrb[0].mxu0
        %1353 = vmatprep.mubr.bf16.mxu0 0
        %1354 = vmatmul.mubr.bf16.gmra.mrb[0].mxu0 %v1293
        %v1355 = vpop.f32.mrb[0].mxu0
        %v1356 = vadd.f32 %v1275, %v1355
        %v1357 = vpop.f32.mrb[0].mxu0
        %v1358 = vpop.f32.mrb[0].mxu0
        %v1359 = vadd.f32 %v1275, %v1358
        %v1360 = vpop.f32.mrb[0].mxu0
        %1361 = vmatprep.mubr.bf16.mxu0 0
        %1362 = vmatmul.mubr.bf16.gmra.mrb[0].mxu0 %v1296
        %v1363 = vpop.f32.mrb[0].mxu0
        %v1364 = vadd.f32 %v1275, %v1363
        %v1365 = vpop.f32.mrb[0].mxu0
        %v1366 = vpop.f32.mrb[0].mxu0
        %v1367 = vadd.f32 %v1275, %v1366
        %v1368 = vpop.f32.mrb[0].mxu0
        %1369 = vmatprep.mubr.bf16.mxu0 0
        %1370 = vmatmul.mubr.bf16.gmra.mrb[0].mxu0 %v1299
        %v1371 = vpop.f32.mrb[0].mxu0
        %v1372 = vadd.f32 %v1275, %v1371
        %v1373 = vpop.f32.mrb[0].mxu0
        %v1374 = vpop.f32.mrb[0].mxu0
        %v1375 = vadd.f32 %v1275, %v1374
        %v1376 = vpop.f32.mrb[0].mxu0
        %1377 = vmatprep.mubr.bf16.mxu0 0
        %1378 = vmatmul.mubr.bf16.gmra.mrb[0].mxu0 %v1302
        %v1379 = vpop.f32.mrb[0].mxu0
        %v1380 = vadd.f32 %v1275, %v1379
        %v1381 = vpop.f32.mrb[0].mxu0
        %v1382 = vpop.f32.mrb[0].mxu0
        %v1383 = vadd.f32 %v1275, %v1382
        %v1384 = vpop.f32.mrb[0].mxu0
        %1385 = vmatprep.mubr.bf16.mxu0 0
        %1386 = vmatmul.mubr.bf16.gmra.mrb[0].mxu0 %v1305
        %v1387 = vpop.f32.mrb[0].mxu0
        %v1388 = vadd.f32 %v1275, %v1387
        %v1389 = vpop.f32.mrb[0].mxu0
        %v1390 = vpop.f32.mrb[0].mxu0
        %v1391 = vadd.f32 %v1275, %v1390
        %v1392 = vpop.f32.mrb[0].mxu0
        %1393 = vmatprep.mubr.bf16.mxu0 0
        %1394 = vmatmul.mubr.bf16.gmra.mrb[0].mxu0 %v1308
        %v1395 = vpop.f32.mrb[0].mxu0
        %v1396 = vadd.f32 %v1275, %v1395
        %v1397 = vpop.f32.mrb[0].mxu0
        %v1398 = vpop.f32.mrb[0].mxu0
        %v1399 = vadd.f32 %v1275, %v1398
        %v1400 = vpop.f32.mrb[0].mxu0
        %1401 = vmatprep.mubr.bf16.mxu0 0
        %1402 = vmatmul.mubr.bf16.gmra.mrb[0].mxu0 %v1311
        %v1403 = vpop.f32.mrb[0].mxu0
        %v1404 = vadd.f32 %v1275, %v1403
        %v1405 = vpop.f32.mrb[0].mxu0
        %v1406 = vpop.f32.mrb[0].mxu0
        %v1407 = vadd.f32 %v1275, %v1406
        %v1408 = vpop.f32.mrb[0].mxu0
        %1409 = vdwg.mxu0
        %v1410 = vadd.f32 %v1348, %v483
        %v1411 = vadd.f32 %v1351, %v484
        %v1412 = vadd.f32 %v1356, %v485
        %v1413 = vadd.f32 %v1359, %v486
        %v1414 = vadd.f32 %v1364, %v487
        %v1415 = vadd.f32 %v1367, %v488
        %v1416 = vadd.f32 %v1372, %v489
        %v1417 = vadd.f32 %v1375, %v490
        %v1418 = vadd.f32 %v1380, %v491
        %v1419 = vadd.f32 %v1383, %v492
        %v1420 = vadd.f32 %v1388, %v493
        %v1421 = vadd.f32 %v1391, %v494
        %v1422 = vadd.f32 %v1396, %v495
        %v1423 = vadd.f32 %v1399, %v496
        %v1424 = vadd.f32 %v1404, %v497
        %v1425 = vadd.f32 %v1407, %v498
        %v1426 = vmax.f32 %v1410, 0.0
        %v1427 = vmax.f32 %v1411, 0.0
        %v1428 = vmax.f32 %v1412, 0.0
        %v1429 = vmax.f32 %v1413, 0.0
        %v1430 = vmax.f32 %v1414, 0.0
        %v1431 = vmax.f32 %v1415, 0.0
        %v1432 = vmax.f32 %v1416, 0.0
        %v1433 = vmax.f32 %v1417, 0.0
        %v1434 = vmax.f32 %v1418, 0.0
        %v1435 = vmax.f32 %v1419, 0.0
        %v1436 = vmax.f32 %v1420, 0.0
        %v1437 = vmax.f32 %v1421, 0.0
        %v1438 = vmax.f32 %v1422, 0.0
        %v1439 = vmax.f32 %v1423, 0.0
        %v1440 = vmax.f32 %v1424, 0.0
        %v1441 = vmax.f32 %v1425, 0.0
        %1442 = vst [vmem:[%s471] sm:$0xff] %v1426
        %1443 = vst [vmem:[%s471 + $0x8] sm:$0xff] %v1427
        %1444 = vst [vmem:[%s471 + $0x10] sm:$0xff] %v1428
        %1445 = vst [vmem:[%s471 + $0x18] sm:$0xff] %v1429
        %1446 = vst [vmem:[%s471 + $0x20] sm:$0xff] %v1430
        %1447 = vst [vmem:[%s471 + $0x28] sm:$0xff] %v1431
        %1448 = vst [vmem:[%s471 + $0x30] sm:$0xff] %v1432
        %1449 = vst [vmem:[%s471 + $0x38] sm:$0xff] %v1433
        %1450 = vst [vmem:[%s471 + $0x40] sm:$0xff] %v1434
        %1451 = vst [vmem:[%s471 + $0x48] sm:$0xff] %v1435
        %1452 = vst [vmem:[%s471 + $0x50] sm:$0xff] %v1436
        %1453 = vst [vmem:[%s471 + $0x58] sm:$0xff] %v1437
        %1454 = vst [vmem:[%s471 + $0x60] sm:$0xff] %v1438
        %1455 = vst [vmem:[%s471 + $0x68] sm:$0xff] %v1439
        %1456 = vst [vmem:[%s471 + $0x70] sm:$0xff] %v1440
        %1457 = vst [vmem:[%s471 + $0x78] sm:$0xff] %v1441
        %s1458 = sand.u32 %s277, 1
        %s1459 = scalar_lea.sflag [#allocation4], %s1458
        %s1460 = sand.u32 %s277, 1
        %s1461 = smul.addr %s1460, 128
        %s1462 = scalar_lea.vmem [#allocation8], %s1461
        // Predicated region
        $region69: #{tpu_custom_call.1} parent=55 // pred_check
          %p1463 = pneg %p287
        $region70: #{tpu_custom_call.1} parent=55 // pred_check_branch
          %1465 = sbr.rel (%p1463) target = $region72
        $region71: #{tpu_custom_call.1} parent=55 // pred_region
          %s1466 = smul.u32 16, %s34
          %s1468 = ssub.s32 2048, 2048
          %1469 = vsyncadd %s1459, %s1468
          %s1470 = smul.addr %s33, 64
          %s1471 = sadd.s32 %s1466, %s1470
          %s1472 = smul.addr %s1471, 128
          %s1473 = scalar_lea.hbm %s9, %s1472
          %s1474 = sshll.u32 %s1462, 4
          %s1475 = int_to_ptr.vmem [resolvable:$true] %s1474
          %1480 = dma.vmem_to_hbm [thread:$0]  %s1475, 2048, %s1473, %s1459, 128, 128, 8
        $region72: #{tpu_custom_call.1} parent=55 // pred_fallthru
          _
      $region56: #{tpu_custom_call.1} parent=5 // pred_fallthru
        _
      %p1481 = scmp.le.s32.totalorder 2, %s24
      // Predicated region
      $region73: #{tpu_custom_call.1} parent=5 // pred_check
        %p1482 = pneg %p1481
      $region74: #{tpu_custom_call.1} parent=5 // pred_check_branch
        %1484 = sbr.rel (%p1482) target = $region76
      $region75: #{tpu_custom_call.1} parent=5 // pred_region
        %s1485 = ssub.s32 %s24, 2
        // Predicated region
        $region77: #{tpu_custom_call.1} parent=75 // pred_check
          %p1486 = pneg %p293
        $region78: #{tpu_custom_call.1} parent=75 // pred_check_branch
          %1488 = sbr.rel (%p1486) target = $region80
        $region79: #{tpu_custom_call.1} parent=75 // pred_region
          %s1489 = sand.u32 %s278, 1
          %s1490 = scalar_lea.sflag [#allocation4], %s1489
          %s1491 = sand.u32 %s278, 1
          %s1492 = smul.addr %s1491, 128
          %s1493 = scalar_lea.vmem [#allocation8], %s1492
          %1494 = dma.done %s1490, 2048
        $region80: #{tpu_custom_call.1} parent=75 // pred_fallthru
          _
      $region76: #{tpu_custom_call.1} parent=5 // pred_fallthru
        _
    $region6: #{tpu_custom_call.1} parent=1 // loop_footer
      %s28 = sadd.s32 1, %s24
    $region7: #{tpu_custom_call.1} parent=1 // loop_footer_branch
      %23 = sbr.rel target = $region3
    $region8: #{tpu_custom_call.1} parent=1 // loop_exit
      _
    %1495 = vsyncpa [#allocation3], 1
    %s1496 = scalar_lea.sflag [#allocation3], 1
    %1497 = vsyncpa %s1496, 1
    %1498 = vsyncpa [#allocation6], 1
    %s1499 = scalar_lea.sflag [#allocation6], 1
    %1500 = vsyncpa %s1499, 1
    %1501 = vsyncpa [#allocation4], 1
    %s1502 = scalar_lea.sflag [#allocation4], 1
    %1503 = vsyncpa %s1502, 1

</llo_original>
